<compile_context>
chip_gen: v5e
topology: v5e:2x2
jax: 0.10.0
libtpu: 0.0.40
codegen_flags: <defaults>
</compile_context>

<pallas_src>
import functools

import jax
import jax.numpy as jnp
from jax.experimental import pallas as pl
from jax.experimental.pallas import tpu as pltpu


def _round_up(a, b):
    return (a + b - 1) // b * b


def _vmem_capacity_bytes():
    try:
        return int(pltpu.get_tpu_info().vmem_capacity_bytes)
    except Exception:
        return 64 * 1024 * 1024  # conservative (v7x per-TensorCore VMEM)


# ---------------- Path A: resident weight, single big-K matmul ----------------
def head_v1_fused_kernel(x_ref, w_ref, b_ref, o_ref, *, precision):
    # x_ref: (TN, K) in storage dtype; w_ref: (K, OUT_pad); b_ref: (1, OUT_pad) f32
    # Pool + BN + Linear all ride the MXU: the 1/HW and BN scale live in w_ref.
    acc = jnp.dot(x_ref[...], w_ref[...],
                  preferred_element_type=jnp.float32, precision=precision)
    o_ref[...] = (acc + b_ref[...]).astype(o_ref.dtype)


# ---------------- Path B: K-tiled contraction with f32 accumulator ------------
def head_v1_ktiled_kernel(x_ref, w_ref, b_ref, o_ref, acc_ref, *,
                          precision, k_valid, tk):
    k = pl.program_id(1)

    @pl.when(k == 0)
    def _():
        acc_ref[...] = jnp.zeros_like(acc_ref)

    x = x_ref[...]
    if k_valid is not None:
        # Last K block is ragged: zero the out-of-bounds (garbage) columns.
        col = jax.lax.broadcasted_iota(jnp.int32, x.shape, 1)
        x = jnp.where(k * tk + col < k_valid, x, jnp.zeros_like(x))

    acc_ref[...] += jnp.dot(x, w_ref[...],
                            preferred_element_type=jnp.float32,
                            precision=precision)

    @pl.when(k == pl.num_programs(1) - 1)
    def _():
        o_ref[...] = (acc_ref[...] + b_ref[...]).astype(o_ref.dtype)


def head_v1_forward(x_nchw, bn_gamma, bn_beta, bn_mean, bn_var,
                    lin_w, lin_b, eps=1e-5):
    """x_nchw: (N, C, H, W); lin_w: (OUT, C) torch layout; lin_b: (OUT,)."""
    N, C, H, W = x_nchw.shape
    OUT = lin_w.shape[0]
    HW = H * W
    K = C * HW

    # Contiguous NCHW flatten -> (N, C*HW); layout-compatible, no HBM copy.
    # x stays in its storage dtype end-to-end (do NOT cast here).
    x2d = x_nchw.reshape(N, K)
    x_it = x2d.dtype.itemsize

    # ---- Fold BN (inference) + 1/HW pooling into the linear weight/bias ----
    inv_std = 1.0 / jnp.sqrt(bn_var.astype(jnp.float32) + eps)
    scale = bn_gamma.astype(jnp.float32) * inv_std                  # (C,)
    shift = bn_beta.astype(jnp.float32) - bn_mean.astype(jnp.float32) * scale
    w_t = lin_w.astype(jnp.float32).T                               # (C, OUT)
    w_fold = (scale / HW)[:, None] * w_t                            # (C, OUT)
    b_fold = shift @ w_t + lin_b.astype(jnp.float32)                # (OUT,)

    OUT_pad = max(128, _round_up(OUT, 128))
    out_dtype = x2d.dtype
    o_it = jnp.dtype(out_dtype).itemsize

    # bf16 x -> bf16 MXU operands (f32 accumulation); f32 x -> f32 + HIGHEST.
    w_dtype = jnp.bfloat16 if x2d.dtype == jnp.bfloat16 else jnp.float32
    w_it = jnp.dtype(w_dtype).itemsize
    precision = (jax.lax.Precision.HIGHEST if w_dtype == jnp.float32
                 else jax.lax.Precision.DEFAULT)

    def build_weight(k_pad):
        # w_big[k, o] = w_fold[k // HW, o]: the spatial sum becomes part of the
        # MXU contraction. Zero-padded to (k_pad, OUT_pad) for lane-dense tiles.
        w_big = jnp.repeat(w_fold, HW, axis=0)                      # (K, OUT)
        w_p = jnp.zeros((k_pad, OUT_pad), jnp.float32).at[:K, :OUT].set(w_big)
        return w_p.astype(w_dtype)

    b_p = jnp.zeros((1, OUT_pad), jnp.float32).at[0, :OUT].set(b_fold)

    # ---- Per-generation VMEM budget ----
    vmem_cap = _vmem_capacity_bytes()
    vmem_budget = int(vmem_cap) * 3 // 4      # 48 MiB on v7x, 96 MiB on v5e/v6e

    row_bytes = K * x_it
    out_row_bytes = OUT_pad * o_it
    bias_bytes = OUT_pad * 4

    # Constant-index-map operands are still double-buffered by the default
    # pipeliner; pl.Buffered(1) would reclaim half of this on v7x but is skipped
    # here for lowering portability, so the budget accounts for 2 copies.
    resident_bytes = 2 * (K * OUT_pad * w_it + bias_bytes)
    min_stream_bytes = 2 * 8 * (row_bytes + out_row_bytes)

    if resident_bytes + min_stream_bytes <= vmem_budget:
        # -------- Path A: weight resident, grid over N only --------
        tn_cap = 2048 if vmem_cap >= 100 * 1024 * 1024 else 1024
        per_row = 2 * (row_bytes + out_row_bytes)          # double-buffered x+out
        TN = (vmem_budget - resident_bytes) // max(per_row, 1)
        TN = max(8, min(tn_cap, TN // 8 * 8))
        TN = min(TN, _round_up(N, 8))                      # clamp by batch size
        if N > 8:                                          # >=2 steps: megacore + overlap
            TN = min(TN, max(8, _round_up(pl.cdiv(N, 2), 8)))
        if N >= 64:                                        # >=8 steps when batch allows
            TN = min(TN, max(8, _round_up(pl.cdiv(N, 8), 8)))

        w_p = build_weight(K)
        cost = pl.CostEstimate(
            flops=2 * N * K * OUT_pad,
            transcendentals=0,
            bytes_accessed=(N * row_bytes + K * OUT_pad * w_it
                            + bias_bytes + N * out_row_bytes))
        kernel = functools.partial(head_v1_fused_kernel, precision=precision)

        out = pl.pallas_call(
            kernel,
            out_shape=jax.ShapeDtypeStruct((N, OUT_pad), out_dtype),
            grid=(pl.cdiv(N, TN),),                        # ragged last block OK
            in_specs=[
                pl.BlockSpec((TN, K), lambda i: (i, 0)),       # streamed x rows
                pl.BlockSpec((K, OUT_pad), lambda i: (0, 0)),  # resident weight
                pl.BlockSpec((1, OUT_pad), lambda i: (0, 0)),  # resident bias
            ],
            out_specs=pl.BlockSpec((TN, OUT_pad), lambda i: (i, 0)),
            compiler_params=pltpu.CompilerParams(
                dimension_semantics=("parallel",),
                vmem_limit_bytes=vmem_budget),
            cost_estimate=cost,
        )(x2d, w_p, b_p)
    else:
        # -------- Path B: expanded weight too big -> tile the contraction --------
        TK = min(4096, _round_up(K, 128))

        def fits(tk):
            return (2 * (tk * OUT_pad * w_it + bias_bytes)
                    + 8 * (2 * tk * x_it + 2 * out_row_bytes + OUT_pad * 4)
                    <= vmem_budget)

        while TK > 512 and not fits(TK):
            TK //= 2

        per_row = 2 * TK * x_it + 2 * out_row_bytes + OUT_pad * 4   # x dbuf+out dbuf+acc
        avail = vmem_budget - 2 * (TK * OUT_pad * w_it + bias_bytes)
        TN = max(8, min(512, (avail // max(per_row, 1)) // 8 * 8))
        TN = min(TN, _round_up(N, 8))
        if N > 8:
            TN = min(TN, max(8, _round_up(pl.cdiv(N, 2), 8)))

        K_pad = _round_up(K, TK)
        w_p = build_weight(K_pad)                          # zero-padded along K
        k_valid = K if K_pad != K else None
        kernel = functools.partial(head_v1_ktiled_kernel,
                                   precision=precision, k_valid=k_valid, tk=TK)
        n_tiles = pl.cdiv(N, TN)
        cost = pl.CostEstimate(
            flops=2 * N * K_pad * OUT_pad,
            transcendentals=0,
            bytes_accessed=(N * row_bytes + n_tiles * K_pad * OUT_pad * w_it
                            + bias_bytes + N * out_row_bytes))

        out = pl.pallas_call(
            kernel,
            out_shape=jax.ShapeDtypeStruct((N, OUT_pad), out_dtype),
            grid=(n_tiles, K_pad // TK),
            in_specs=[
                pl.BlockSpec((TN, TK), lambda i, k: (i, k)),
                pl.BlockSpec((TK, OUT_pad), lambda i, k: (k, 0)),
                pl.BlockSpec((1, OUT_pad), lambda i, k: (0, 0)),
            ],
            out_specs=pl.BlockSpec((TN, OUT_pad), lambda i, k: (i, 0)),
            scratch_shapes=[pltpu.VMEM((TN, OUT_pad), jnp.float32)],
            compiler_params=pltpu.CompilerParams(
                dimension_semantics=("parallel", "arbitrary"),
                vmem_limit_bytes=vmem_budget),
            cost_estimate=cost,
        )(x2d, w_p, b_p)

    return out[:, :OUT]


if __name__ == "__main__":
    key = jax.random.PRNGKey(0)
    N, C, H, W = 2, 4, 16, 16
    OUT = 8

    k_x, k_w, k_b, k_g, k_be = jax.random.split(key, 5)
    x = jax.random.normal(k_x, (N, C, H, W), dtype=jnp.float32)

    # BatchNorm1d(C): perturb gamma/beta deterministically so the BN path is exercised.
    bn_gamma = 1.0 + 0.1 * jax.random.normal(k_g, (C,), dtype=jnp.float32)
    bn_beta = 0.1 * jax.random.normal(k_be, (C,), dtype=jnp.float32)
    bn_mean = jnp.zeros((C,), dtype=jnp.float32)
    bn_var = jnp.ones((C,), dtype=jnp.float32)

    # Linear(C, OUT): torch-style weight (OUT, C) and bias (OUT,)
    lin_w = 0.05 * jax.random.normal(k_w, (OUT, C), dtype=jnp.float32)
    lin_b = 0.05 * jax.random.normal(k_b, (OUT,), dtype=jnp.float32)

    out = head_v1_forward(x, bn_gamma, bn_beta, bn_mean, bn_var, lin_w, lin_b)
    out = jax.block_until_ready(out)

    # Reference check in plain JAX (eval-mode semantics).
    pooled = x.mean(axis=(2, 3))
    ref = (pooled - bn_mean) / jnp.sqrt(bn_var + 1e-5) * bn_gamma + bn_beta
    ref = ref @ lin_w.T + lin_b
    assert out.shape == ref.shape
    assert jnp.allclose(out, ref, atol=1e-4, rtol=1e-4)

    # TODO(synk): training-mode Dropout (pltpu.prng_*) and BN batch-statistics are
    # intentionally omitted; eval-mode Dropout is identity and BN uses running stats.
    print("KERNEL_OK")
</pallas_src>

<mosaic_0001>
module attributes {stable_mosaic.version = 11 : i64} {
  func.func @head_v1_fused_kernel(%arg0: i32, %arg1: memref<8x1024xf32, #tpu.memory_space<vmem>>, %arg2: memref<1024x128xf32, #tpu.memory_space<vmem>>, %arg3: memref<1x128xf32, #tpu.memory_space<vmem>>, %arg4: memref<8x128xf32, #tpu.memory_space<vmem>>) attributes {dimension_semantics = [#tpu.dimension_semantics<parallel>], iteration_bounds = array<i64: 1>, scalar_prefetch = 0 : i64, scratch_operands = 0 : i64, tpu.core_type = #tpu.core_type<tc>, window_params = [{transform_indices = @transform_0, window_bounds = array<i64: 8, 1024>}, {pipeline_mode = #tpu.pipeline_mode<synchronous>, transform_indices = @transform_1, window_bounds = array<i64: 1024, 128>}, {pipeline_mode = #tpu.pipeline_mode<synchronous>, transform_indices = @transform_2, window_bounds = array<i64: 1, 128>}, {transform_indices = @transform_3, window_bounds = array<i64: 8, 128>}]} {
    %c0 = arith.constant 0 : index
    %c0_0 = arith.constant 0 : index
    %0 = vector.load %arg1[%c0, %c0_0] : memref<8x1024xf32, #tpu.memory_space<vmem>>, vector<8x1024xf32>
    %c0_1 = arith.constant 0 : index
    %c0_2 = arith.constant 0 : index
    %1 = vector.load %arg2[%c0_1, %c0_2] : memref<1024x128xf32, #tpu.memory_space<vmem>>, vector<1024x128xf32>
    %cst = arith.constant dense<0.000000e+00> : vector<8x128xf32>
    %2 = tpu.matmul %0, %1, %cst {dimension_numbers = #tpu.dot_dimension_numbers<[1], [0], [0], [1], [0, 0, 1, 1], [], []>, precision = #tpu.contract_precision<fp32>} : vector<8x1024xf32>, vector<1024x128xf32>, vector<8x128xf32> -> vector<8x128xf32>
    %c0_3 = arith.constant 0 : index
    %c0_4 = arith.constant 0 : index
    %3 = vector.load %arg3[%c0_3, %c0_4] : memref<1x128xf32, #tpu.memory_space<vmem>>, vector<1x128xf32>
    %4 = vector.broadcast %3 : vector<1x128xf32> to vector<8x128xf32>
    %5 = arith.addf %2, %4 : vector<8x128xf32>
    %c0_5 = arith.constant 0 : index
    %c0_6 = arith.constant 0 : index
    %6 = vector.load %arg4[%c0_5, %c0_6] : memref<8x128xf32, #tpu.memory_space<vmem>>, vector<8x128xf32>
    tpu.vector_store %arg4[%c0_5, %c0_6], %5 {strides = array<i32>} : memref<8x128xf32, #tpu.memory_space<vmem>>, vector<8x128xf32>,
    return
  }
  func.func @transform_0(%arg0: i32) -> (i32, i32) {
    %c0_i32 = arith.constant 0 : i32
    %c0_i32_0 = arith.constant 0 : i32
    return %arg0, %c0_i32 : i32, i32
  }
  func.func @transform_1(%arg0: i32) -> (i32, i32) {
    %c0_i32 = arith.constant 0 : i32
    %c0_i32_0 = arith.constant 0 : i32
    %c0_i32_1 = arith.constant 0 : i32
    return %c0_i32, %c0_i32_0 : i32, i32
  }
  func.func @transform_2(%arg0: i32) -> (i32, i32) {
    %c0_i32 = arith.constant 0 : i32
    %c0_i32_0 = arith.constant 0 : i32
    %c0_i32_1 = arith.constant 0 : i32
    return %c0_i32, %c0_i32_0 : i32, i32
  }
  func.func @transform_3(%arg0: i32) -> (i32, i32) {
    %c0_i32 = arith.constant 0 : i32
    %c0_i32_0 = arith.constant 0 : i32
    return %arg0, %c0_i32 : i32, i32
  }
}

</mosaic_0001>

<llo_original>
// kernel: tpu_custom_call.1
$region0: #{tpu_custom_call.1}
  #allocation0 [shape = 'u32[]', space=smem, size = 0x4, offset = 0x4, fixed_abs, tag = 'smem constant byte address 0x4 - core index']
  #allocation1 [shape = 'u32[72,128]{1,0:T(1,128)}', space=vmem, size = 0x9000, scoped, tag = 'internal scratch']
  %s0 = inlined_call_operand.hbm [shape: f32[2,1024], index: 0, kind: input, shape index: {}]
  %s1 = inlined_call_operand.hbm [shape: f32[1024,128], index: 1, kind: input, shape index: {}]
  %s2 = inlined_call_operand.vmem [shape: f32[1,128], index: 2, kind: input, shape index: {}]
  %s3 = inlined_call_operand.hbm [shape: f32[2,128], index: 3, kind: output, shape index: {}]
  %s4 = sld [smem:[#allocation0]]
  $region30: #{tpu_custom_call.1} parent=0
    _
  %s6 = ssub.s32 1, %s4
  %s7 = scalar_select 0, %s6, %s4
  $region1: #{tpu_custom_call.1} parent=0
    #allocation2 [shape = 'u8[32768]{0}', space=vmem, size = 0x8000, scoped, tag = 'input window, operand 0, single buffered']
    #allocation3 [shape = 's32[1]{0}', space=sflag, size = 0x4, scoped, tag = 'scoped memory for tpu_custom_call.1']
    #allocation4 [shape = 's32[1]{0}', space=sflag, size = 0x4, scoped, tag = 'scoped memory for tpu_custom_call.1']
    #allocation5 [shape = 'u8[524288]{0}', space=vmem, size = 0x80000, scoped, tag = 'input window, operand 1, single buffered']
    #allocation6 [shape = 's32[1]{0}', space=sflag, size = 0x4, scoped, tag = 'scoped memory for tpu_custom_call.1']
    #allocation7 [shape = 'u8[4096]{0}', space=vmem, size = 0x1000, scoped, tag = 'output window, operand 0, single buffered']
    %8 = vsyncpa [#allocation3], 0
    %9 = vsyncpa [#allocation6], 0
    %10 = vsyncpa [#allocation4], 0
    // Predicated region
    $region2: #{tpu_custom_call.1} parent=1 // pred_check
      _
    $region3: #{tpu_custom_call.1} parent=1 // pred_check_branch
      %12 = sbr.rel (0) target = $region5
    $region4: #{tpu_custom_call.1} parent=1 // pred_region
      %14 = vsyncadd [#allocation3], 768
      %s15 = sshll.u32 %s0, 4
      %s16 = int_to_ptr.hbm [resolvable:$true] %s15
      %s17 = sshll.u32 [#allocation2], 4
      %s18 = int_to_ptr.vmem [resolvable:$true] %s17
      %23 = dma.hbm_to_vmem [thread:$0]  %s16, 256, %s18, [#allocation3], 256, 256, 16
    $region5: #{tpu_custom_call.1} parent=1 // pred_fallthru
      _
    // Predicated region
    $region6: #{tpu_custom_call.1} parent=1 // pred_check
      _
    $region7: #{tpu_custom_call.1} parent=1 // pred_check_branch
      %25 = sbr.rel (0) target = $region9
    $region8: #{tpu_custom_call.1} parent=1 // pred_region
      %27 = vsyncadd [#allocation6], 0
      %s28 = sshll.u32 %s1, 4
      %s29 = int_to_ptr.hbm [resolvable:$true] %s28
      %s30 = sshll.u32 [#allocation5], 4
      %s31 = int_to_ptr.vmem [resolvable:$true] %s30
      %36 = dma.hbm_to_vmem [thread:$0]  %s29, 16384, %s31, [#allocation6], 128, 128, 8
    $region9: #{tpu_custom_call.1} parent=1 // pred_fallthru
      _
    // Predicated region
    $region10: #{tpu_custom_call.1} parent=1 // pred_check
      _
    $region11: #{tpu_custom_call.1} parent=1 // pred_check_branch
      %38 = sbr.rel (0) target = $region13
    $region12: #{tpu_custom_call.1} parent=1 // pred_region
      _
    $region13: #{tpu_custom_call.1} parent=1 // pred_fallthru
      _
    // Predicated region
    $region14: #{tpu_custom_call.1} parent=1 // pred_check
      _
    $region15: #{tpu_custom_call.1} parent=1 // pred_check_branch
      %40 = sbr.rel (0) target = $region17
    $region16: #{tpu_custom_call.1} parent=1 // pred_region
      %42 = dma.done [#allocation3], 1024
    $region17: #{tpu_custom_call.1} parent=1 // pred_fallthru
      _
    // Predicated region
    $region18: #{tpu_custom_call.1} parent=1 // pred_check
      _
    $region19: #{tpu_custom_call.1} parent=1 // pred_check_branch
      %44 = sbr.rel (0) target = $region21
    $region20: #{tpu_custom_call.1} parent=1 // pred_region
      %46 = dma.done [#allocation6], 16384
    $region21: #{tpu_custom_call.1} parent=1 // pred_fallthru
      _
    %v47 = vld [vmem:[#allocation2] sm:$0xff]
    %v48 = vld [vmem:[#allocation2 + $0x8] sm:$0xff]
    %v49 = vld [vmem:[#allocation2 + $0x10] sm:$0xff]
    %v50 = vld [vmem:[#allocation2 + $0x18] sm:$0xff]
    %v51 = vld [vmem:[#allocation2 + $0x20] sm:$0xff]
    %v52 = vld [vmem:[#allocation2 + $0x28] sm:$0xff]
    %v53 = vld [vmem:[#allocation2 + $0x30] sm:$0xff]
    %v54 = vld [vmem:[#allocation2 + $0x38] sm:$0xff]
    %v55 = vld [vmem:[#allocation5] sm:$0xff]
    %v56 = vld [vmem:[#allocation5 + $0x8] sm:$0xff]
    %v57 = vld [vmem:[#allocation5 + $0x10] sm:$0xff]
    %v58 = vld [vmem:[#allocation5 + $0x18] sm:$0xff]
    %v59 = vld [vmem:[#allocation5 + $0x20] sm:$0xff]
    %v60 = vld [vmem:[#allocation5 + $0x28] sm:$0xff]
    %v61 = vld [vmem:[#allocation5 + $0x30] sm:$0xff]
    %v62 = vld [vmem:[#allocation5 + $0x38] sm:$0xff]
    %v63 = vld [vmem:[#allocation5 + $0x40] sm:$0xff]
    %v64 = vld [vmem:[#allocation5 + $0x48] sm:$0xff]
    %v65 = vld [vmem:[#allocation5 + $0x50] sm:$0xff]
    %v66 = vld [vmem:[#allocation5 + $0x58] sm:$0xff]
    %v67 = vld [vmem:[#allocation5 + $0x60] sm:$0xff]
    %v68 = vld [vmem:[#allocation5 + $0x68] sm:$0xff]
    %v69 = vld [vmem:[#allocation5 + $0x70] sm:$0xff]
    %v70 = vld [vmem:[#allocation5 + $0x78] sm:$0xff]
    %v71 = vld [vmem:[#allocation5 + $0x80] sm:$0xff]
    %v72 = vld [vmem:[#allocation5 + $0x88] sm:$0xff]
    %v73 = vld [vmem:[#allocation5 + $0x90] sm:$0xff]
    %v74 = vld [vmem:[#allocation5 + $0x98] sm:$0xff]
    %v75 = vld [vmem:[#allocation5 + $0xa0] sm:$0xff]
    %v76 = vld [vmem:[#allocation5 + $0xa8] sm:$0xff]
    %v77 = vld [vmem:[#allocation5 + $0xb0] sm:$0xff]
    %v78 = vld [vmem:[#allocation5 + $0xb8] sm:$0xff]
    %v79 = vld [vmem:[#allocation5 + $0xc0] sm:$0xff]
    %v80 = vld [vmem:[#allocation5 + $0xc8] sm:$0xff]
    %v81 = vld [vmem:[#allocation5 + $0xd0] sm:$0xff]
    %v82 = vld [vmem:[#allocation5 + $0xd8] sm:$0xff]
    %v83 = vld [vmem:[#allocation5 + $0xe0] sm:$0xff]
    %v84 = vld [vmem:[#allocation5 + $0xe8] sm:$0xff]
    %v85 = vld [vmem:[#allocation5 + $0xf0] sm:$0xff]
    %v86 = vld [vmem:[#allocation5 + $0xf8] sm:$0xff]
    %v87 = vld [vmem:[#allocation5 + $0x100] sm:$0xff]
    %v88 = vld [vmem:[#allocation5 + $0x108] sm:$0xff]
    %v89 = vld [vmem:[#allocation5 + $0x110] sm:$0xff]
    %v90 = vld [vmem:[#allocation5 + $0x118] sm:$0xff]
    %v91 = vld [vmem:[#allocation5 + $0x120] sm:$0xff]
    %v92 = vld [vmem:[#allocation5 + $0x128] sm:$0xff]
    %v93 = vld [vmem:[#allocation5 + $0x130] sm:$0xff]
    %v94 = vld [vmem:[#allocation5 + $0x138] sm:$0xff]
    %v95 = vld [vmem:[#allocation5 + $0x140] sm:$0xff]
    %v96 = vld [vmem:[#allocation5 + $0x148] sm:$0xff]
    %v97 = vld [vmem:[#allocation5 + $0x150] sm:$0xff]
    %v98 = vld [vmem:[#allocation5 + $0x158] sm:$0xff]
    %v99 = vld [vmem:[#allocation5 + $0x160] sm:$0xff]
    %v100 = vld [vmem:[#allocation5 + $0x168] sm:$0xff]
    %v101 = vld [vmem:[#allocation5 + $0x170] sm:$0xff]
    %v102 = vld [vmem:[#allocation5 + $0x178] sm:$0xff]
    %v103 = vld [vmem:[#allocation5 + $0x180] sm:$0xff]
    %v104 = vld [vmem:[#allocation5 + $0x188] sm:$0xff]
    %v105 = vld [vmem:[#allocation5 + $0x190] sm:$0xff]
    %v106 = vld [vmem:[#allocation5 + $0x198] sm:$0xff]
    %v107 = vld [vmem:[#allocation5 + $0x1a0] sm:$0xff]
    %v108 = vld [vmem:[#allocation5 + $0x1a8] sm:$0xff]
    %v109 = vld [vmem:[#allocation5 + $0x1b0] sm:$0xff]
    %v110 = vld [vmem:[#allocation5 + $0x1b8] sm:$0xff]
    %v111 = vld [vmem:[#allocation5 + $0x1c0] sm:$0xff]
    %v112 = vld [vmem:[#allocation5 + $0x1c8] sm:$0xff]
    %v113 = vld [vmem:[#allocation5 + $0x1d0] sm:$0xff]
    %v114 = vld [vmem:[#allocation5 + $0x1d8] sm:$0xff]
    %v115 = vld [vmem:[#allocation5 + $0x1e0] sm:$0xff]
    %v116 = vld [vmem:[#allocation5 + $0x1e8] sm:$0xff]
    %v117 = vld [vmem:[#allocation5 + $0x1f0] sm:$0xff]
    %v118 = vld [vmem:[#allocation5 + $0x1f8] sm:$0xff]
    %v119 = vld [vmem:[#allocation5 + $0x200] sm:$0xff]
    %v120 = vld [vmem:[#allocation5 + $0x208] sm:$0xff]
    %v121 = vld [vmem:[#allocation5 + $0x210] sm:$0xff]
    %v122 = vld [vmem:[#allocation5 + $0x218] sm:$0xff]
    %v123 = vld [vmem:[#allocation5 + $0x220] sm:$0xff]
    %v124 = vld [vmem:[#allocation5 + $0x228] sm:$0xff]
    %v125 = vld [vmem:[#allocation5 + $0x230] sm:$0xff]
    %v126 = vld [vmem:[#allocation5 + $0x238] sm:$0xff]
    %v127 = vld [vmem:[#allocation5 + $0x240] sm:$0xff]
    %v128 = vld [vmem:[#allocation5 + $0x248] sm:$0xff]
    %v129 = vld [vmem:[#allocation5 + $0x250] sm:$0xff]
    %v130 = vld [vmem:[#allocation5 + $0x258] sm:$0xff]
    %v131 = vld [vmem:[#allocation5 + $0x260] sm:$0xff]
    %v132 = vld [vmem:[#allocation5 + $0x268] sm:$0xff]
    %v133 = vld [vmem:[#allocation5 + $0x270] sm:$0xff]
    %v134 = vld [vmem:[#allocation5 + $0x278] sm:$0xff]
    %v135 = vld [vmem:[#allocation5 + $0x280] sm:$0xff]
    %v136 = vld [vmem:[#allocation5 + $0x288] sm:$0xff]
    %v137 = vld [vmem:[#allocation5 + $0x290] sm:$0xff]
    %v138 = vld [vmem:[#allocation5 + $0x298] sm:$0xff]
    %v139 = vld [vmem:[#allocation5 + $0x2a0] sm:$0xff]
    %v140 = vld [vmem:[#allocation5 + $0x2a8] sm:$0xff]
    %v141 = vld [vmem:[#allocation5 + $0x2b0] sm:$0xff]
    %v142 = vld [vmem:[#allocation5 + $0x2b8] sm:$0xff]
    %v143 = vld [vmem:[#allocation5 + $0x2c0] sm:$0xff]
    %v144 = vld [vmem:[#allocation5 + $0x2c8] sm:$0xff]
    %v145 = vld [vmem:[#allocation5 + $0x2d0] sm:$0xff]
    %v146 = vld [vmem:[#allocation5 + $0x2d8] sm:$0xff]
    %v147 = vld [vmem:[#allocation5 + $0x2e0] sm:$0xff]
    %v148 = vld [vmem:[#allocation5 + $0x2e8] sm:$0xff]
    %v149 = vld [vmem:[#allocation5 + $0x2f0] sm:$0xff]
    %v150 = vld [vmem:[#allocation5 + $0x2f8] sm:$0xff]
    %v151 = vld [vmem:[#allocation5 + $0x300] sm:$0xff]
    %v152 = vld [vmem:[#allocation5 + $0x308] sm:$0xff]
    %v153 = vld [vmem:[#allocation5 + $0x310] sm:$0xff]
    %v154 = vld [vmem:[#allocation5 + $0x318] sm:$0xff]
    %v155 = vld [vmem:[#allocation5 + $0x320] sm:$0xff]
    %v156 = vld [vmem:[#allocation5 + $0x328] sm:$0xff]
    %v157 = vld [vmem:[#allocation5 + $0x330] sm:$0xff]
    %v158 = vld [vmem:[#allocation5 + $0x338] sm:$0xff]
    %v159 = vld [vmem:[#allocation5 + $0x340] sm:$0xff]
    %v160 = vld [vmem:[#allocation5 + $0x348] sm:$0xff]
    %v161 = vld [vmem:[#allocation5 + $0x350] sm:$0xff]
    %v162 = vld [vmem:[#allocation5 + $0x358] sm:$0xff]
    %v163 = vld [vmem:[#allocation5 + $0x360] sm:$0xff]
    %v164 = vld [vmem:[#allocation5 + $0x368] sm:$0xff]
    %v165 = vld [vmem:[#allocation5 + $0x370] sm:$0xff]
    %v166 = vld [vmem:[#allocation5 + $0x378] sm:$0xff]
    %v167 = vld [vmem:[#allocation5 + $0x380] sm:$0xff]
    %v168 = vld [vmem:[#allocation5 + $0x388] sm:$0xff]
    %v169 = vld [vmem:[#allocation5 + $0x390] sm:$0xff]
    %v170 = vld [vmem:[#allocation5 + $0x398] sm:$0xff]
    %v171 = vld [vmem:[#allocation5 + $0x3a0] sm:$0xff]
    %v172 = vld [vmem:[#allocation5 + $0x3a8] sm:$0xff]
    %v173 = vld [vmem:[#allocation5 + $0x3b0] sm:$0xff]
    %v174 = vld [vmem:[#allocation5 + $0x3b8] sm:$0xff]
    %v175 = vld [vmem:[#allocation5 + $0x3c0] sm:$0xff]
    %v176 = vld [vmem:[#allocation5 + $0x3c8] sm:$0xff]
    %v177 = vld [vmem:[#allocation5 + $0x3d0] sm:$0xff]
    %v178 = vld [vmem:[#allocation5 + $0x3d8] sm:$0xff]
    %v179 = vld [vmem:[#allocation5 + $0x3e0] sm:$0xff]
    %v180 = vld [vmem:[#allocation5 + $0x3e8] sm:$0xff]
    %v181 = vld [vmem:[#allocation5 + $0x3f0] sm:$0xff]
    %v182 = vld [vmem:[#allocation5 + $0x3f8] sm:$0xff]
    %v183 = vld [vmem:[%s2] sm:$0x1]
    %v185 = vperm.slane %v183, 0
    %195 = vst [vmem:[#allocation1] ss:$4 sm:$0xff] %v47
    %s196 = scalar_lea.vmem [#allocation1], 1
    %197 = vst [vmem:[%s196] ss:$4 sm:$0xff] %v49
    %s198 = scalar_lea.vmem [#allocation1], 2
    %199 = vst [vmem:[%s198] ss:$4 sm:$0xff] %v51
    %s200 = scalar_lea.vmem [#allocation1], 3
    %201 = vst [vmem:[%s200] ss:$4 sm:$0xff] %v53
    %s202 = scalar_lea.vmem [#allocation1], 32
    %203 = vst [vmem:[%s202] ss:$4 sm:$0xff] %v48
    %s204 = scalar_lea.vmem [#allocation1], 33
    %205 = vst [vmem:[%s204] ss:$4 sm:$0xff] %v50
    %s206 = scalar_lea.vmem [#allocation1], 34
    %207 = vst [vmem:[%s206] ss:$4 sm:$0xff] %v52
    %s208 = scalar_lea.vmem [#allocation1], 35
    %209 = vst [vmem:[%s208] ss:$4 sm:$0xff] %v54
    %v210 = vld.sshfl [vmem:[#allocation1] sm:$0xff pattern:$0x73625140]
    %v211 = vld.sshfl [vmem:[#allocation1 + $0x8] sm:$0xff pattern:$0x73625140]
    %v212 = vld.sshfl [vmem:[#allocation1 + $0x10] sm:$0xff pattern:$0x73625140]
    %v213 = vld.sshfl [vmem:[#allocation1 + $0x18] sm:$0xff pattern:$0x73625140]
    %v214 = vld.sshfl [vmem:[#allocation1 + $0x20] sm:$0xff pattern:$0x73625140]
    %v215 = vld.sshfl [vmem:[#allocation1 + $0x28] sm:$0xff pattern:$0x73625140]
    %v216 = vld.sshfl [vmem:[#allocation1 + $0x30] sm:$0xff pattern:$0x73625140]
    %v217 = vld.sshfl [vmem:[#allocation1 + $0x38] sm:$0xff pattern:$0x73625140]
    %v226 = vand.u32 %v70, 4294901760
    %227 = vmatpush.msra.mxu0 %v226
    %v228 = vand.u32 %v69, 4294901760
    %229 = vmatpush.msra.mxu0 %v228
    %v230 = vand.u32 %v68, 4294901760
    %231 = vmatpush.msra.mxu0 %v230
    %v232 = vand.u32 %v67, 4294901760
    %233 = vmatpush.msra.mxu0 %v232
    %v234 = vand.u32 %v66, 4294901760
    %235 = vmatpush.msra.mxu0 %v234
    %v236 = vand.u32 %v65, 4294901760
    %237 = vmatpush.msra.mxu0 %v236
    %v238 = vand.u32 %v64, 4294901760
    %239 = vmatpush.msra.mxu0 %v238
    %v240 = vand.u32 %v63, 4294901760
    %241 = vmatpush.msra.mxu0 %v240
    %v242 = vand.u32 %v62, 4294901760
    %243 = vmatpush.msra.mxu0 %v242
    %v244 = vand.u32 %v61, 4294901760
    %245 = vmatpush.msra.mxu0 %v244
    %v246 = vand.u32 %v60, 4294901760
    %247 = vmatpush.msra.mxu0 %v246
    %v248 = vand.u32 %v59, 4294901760
    %249 = vmatpush.msra.mxu0 %v248
    %v250 = vand.u32 %v58, 4294901760
    %251 = vmatpush.msra.mxu0 %v250
    %v252 = vand.u32 %v57, 4294901760
    %253 = vmatpush.msra.mxu0 %v252
    %v254 = vand.u32 %v56, 4294901760
    %255 = vmatpush.msra.mxu0 %v254
    %v256 = vand.u32 %v55, 4294901760
    %257 = vmatpush.msra.mxu0 %v256
    %v258 = vand.u32 %v210, 4294901760
    %v259 = vsub.f32 %v210, %v258
    %v260 = vand.u32 %v259, 4294901760
    %v261 = vsub.f32 %v259, %v260
    %v262 = vand.u32 %v261, 4294901760
    %263 = vmatmul.f32.gmra.mxu0 %v262
    %v264 = vpop.f32.mrf.mxu0
    %v265 = vadd.f32 %v185, %v264
    %266 = vdwg.mxu0
    %v267 = vand.u32 %v70, 4294901760
    %v268 = vsub.f32 %v70, %v267
    %v269 = vand.u32 %v268, 4294901760
    %v270 = vsub.f32 %v268, %v269
    %v271 = vand.u32 %v270, 4294901760
    %272 = vmatpush.msra.mxu0 %v271
    %v273 = vand.u32 %v69, 4294901760
    %v274 = vsub.f32 %v69, %v273
    %v275 = vand.u32 %v274, 4294901760
    %v276 = vsub.f32 %v274, %v275
    %v277 = vand.u32 %v276, 4294901760
    %278 = vmatpush.msra.mxu0 %v277
    %v279 = vand.u32 %v68, 4294901760
    %v280 = vsub.f32 %v68, %v279
    %v281 = vand.u32 %v280, 4294901760
    %v282 = vsub.f32 %v280, %v281
    %v283 = vand.u32 %v282, 4294901760
    %284 = vmatpush.msra.mxu0 %v283
    %v285 = vand.u32 %v67, 4294901760
    %v286 = vsub.f32 %v67, %v285
    %v287 = vand.u32 %v286, 4294901760
    %v288 = vsub.f32 %v286, %v287
    %v289 = vand.u32 %v288, 4294901760
    %290 = vmatpush.msra.mxu0 %v289
    %v291 = vand.u32 %v66, 4294901760
    %v292 = vsub.f32 %v66, %v291
    %v293 = vand.u32 %v292, 4294901760
    %v294 = vsub.f32 %v292, %v293
    %v295 = vand.u32 %v294, 4294901760
    %296 = vmatpush.msra.mxu0 %v295
    %v297 = vand.u32 %v65, 4294901760
    %v298 = vsub.f32 %v65, %v297
    %v299 = vand.u32 %v298, 4294901760
    %v300 = vsub.f32 %v298, %v299
    %v301 = vand.u32 %v300, 4294901760
    %302 = vmatpush.msra.mxu0 %v301
    %v303 = vand.u32 %v64, 4294901760
    %v304 = vsub.f32 %v64, %v303
    %v305 = vand.u32 %v304, 4294901760
    %v306 = vsub.f32 %v304, %v305
    %v307 = vand.u32 %v306, 4294901760
    %308 = vmatpush.msra.mxu0 %v307
    %v309 = vand.u32 %v63, 4294901760
    %v310 = vsub.f32 %v63, %v309
    %v311 = vand.u32 %v310, 4294901760
    %v312 = vsub.f32 %v310, %v311
    %v313 = vand.u32 %v312, 4294901760
    %314 = vmatpush.msra.mxu0 %v313
    %v315 = vand.u32 %v62, 4294901760
    %v316 = vsub.f32 %v62, %v315
    %v317 = vand.u32 %v316, 4294901760
    %v318 = vsub.f32 %v316, %v317
    %v319 = vand.u32 %v318, 4294901760
    %320 = vmatpush.msra.mxu0 %v319
    %v321 = vand.u32 %v61, 4294901760
    %v322 = vsub.f32 %v61, %v321
    %v323 = vand.u32 %v322, 4294901760
    %v324 = vsub.f32 %v322, %v323
    %v325 = vand.u32 %v324, 4294901760
    %326 = vmatpush.msra.mxu0 %v325
    %v327 = vand.u32 %v60, 4294901760
    %v328 = vsub.f32 %v60, %v327
    %v329 = vand.u32 %v328, 4294901760
    %v330 = vsub.f32 %v328, %v329
    %v331 = vand.u32 %v330, 4294901760
    %332 = vmatpush.msra.mxu0 %v331
    %v333 = vand.u32 %v59, 4294901760
    %v334 = vsub.f32 %v59, %v333
    %v335 = vand.u32 %v334, 4294901760
    %v336 = vsub.f32 %v334, %v335
    %v337 = vand.u32 %v336, 4294901760
    %338 = vmatpush.msra.mxu0 %v337
    %v339 = vand.u32 %v58, 4294901760
    %v340 = vsub.f32 %v58, %v339
    %v341 = vand.u32 %v340, 4294901760
    %v342 = vsub.f32 %v340, %v341
    %v343 = vand.u32 %v342, 4294901760
    %344 = vmatpush.msra.mxu0 %v343
    %v345 = vand.u32 %v57, 4294901760
    %v346 = vsub.f32 %v57, %v345
    %v347 = vand.u32 %v346, 4294901760
    %v348 = vsub.f32 %v346, %v347
    %v349 = vand.u32 %v348, 4294901760
    %350 = vmatpush.msra.mxu0 %v349
    %v351 = vand.u32 %v56, 4294901760
    %v352 = vsub.f32 %v56, %v351
    %v353 = vand.u32 %v352, 4294901760
    %v354 = vsub.f32 %v352, %v353
    %v355 = vand.u32 %v354, 4294901760
    %356 = vmatpush.msra.mxu0 %v355
    %v357 = vand.u32 %v55, 4294901760
    %v358 = vsub.f32 %v55, %v357
    %v359 = vand.u32 %v358, 4294901760
    %v360 = vsub.f32 %v358, %v359
    %v361 = vand.u32 %v360, 4294901760
    %362 = vmatpush.msra.mxu0 %v361
    %v363 = vand.u32 %v210, 4294901760
    %364 = vmatmul.f32.gmra.mxu0 %v363
    %v365 = vpop.f32.mrf.mxu0
    %v366 = vadd.f32 %v265, %v365
    %367 = vdwg.mxu0
    %v368 = vand.u32 %v70, 4294901760
    %v369 = vsub.f32 %v70, %v368
    %370 = vmatpush.msra.mxu0 %v369
    %v371 = vand.u32 %v69, 4294901760
    %v372 = vsub.f32 %v69, %v371
    %373 = vmatpush.msra.mxu0 %v372
    %v374 = vand.u32 %v68, 4294901760
    %v375 = vsub.f32 %v68, %v374
    %376 = vmatpush.msra.mxu0 %v375
    %v377 = vand.u32 %v67, 4294901760
    %v378 = vsub.f32 %v67, %v377
    %379 = vmatpush.msra.mxu0 %v378
    %v380 = vand.u32 %v66, 4294901760
    %v381 = vsub.f32 %v66, %v380
    %382 = vmatpush.msra.mxu0 %v381
    %v383 = vand.u32 %v65, 4294901760
    %v384 = vsub.f32 %v65, %v383
    %385 = vmatpush.msra.mxu0 %v384
    %v386 = vand.u32 %v64, 4294901760
    %v387 = vsub.f32 %v64, %v386
    %388 = vmatpush.msra.mxu0 %v387
    %v389 = vand.u32 %v63, 4294901760
    %v390 = vsub.f32 %v63, %v389
    %391 = vmatpush.msra.mxu0 %v390
    %v392 = vand.u32 %v62, 4294901760
    %v393 = vsub.f32 %v62, %v392
    %394 = vmatpush.msra.mxu0 %v393
    %v395 = vand.u32 %v61, 4294901760
    %v396 = vsub.f32 %v61, %v395
    %397 = vmatpush.msra.mxu0 %v396
    %v398 = vand.u32 %v60, 4294901760
    %v399 = vsub.f32 %v60, %v398
    %400 = vmatpush.msra.mxu0 %v399
    %v401 = vand.u32 %v59, 4294901760
    %v402 = vsub.f32 %v59, %v401
    %403 = vmatpush.msra.mxu0 %v402
    %v404 = vand.u32 %v58, 4294901760
    %v405 = vsub.f32 %v58, %v404
    %406 = vmatpush.msra.mxu0 %v405
    %v407 = vand.u32 %v57, 4294901760
    %v408 = vsub.f32 %v57, %v407
    %409 = vmatpush.msra.mxu0 %v408
    %v410 = vand.u32 %v56, 4294901760
    %v411 = vsub.f32 %v56, %v410
    %412 = vmatpush.msra.mxu0 %v411
    %v413 = vand.u32 %v55, 4294901760
    %v414 = vsub.f32 %v55, %v413
    %415 = vmatpush.msra.mxu0 %v414
    %v416 = vand.u32 %v210, 4294901760
    %v417 = vsub.f32 %v210, %v416
    %418 = vmatmul.f32.gmra.mxu0 %v417
    %v419 = vpop.f32.mrf.mxu0
    %v420 = vadd.f32 %v366, %v419
    %421 = vdwg.mxu0
    %v422 = vand.u32 %v70, 4294901760
    %423 = vmatpush.msra.mxu0 %v422
    %v424 = vand.u32 %v69, 4294901760
    %425 = vmatpush.msra.mxu0 %v424
    %v426 = vand.u32 %v68, 4294901760
    %427 = vmatpush.msra.mxu0 %v426
    %v428 = vand.u32 %v67, 4294901760
    %429 = vmatpush.msra.mxu0 %v428
    %v430 = vand.u32 %v66, 4294901760
    %431 = vmatpush.msra.mxu0 %v430
    %v432 = vand.u32 %v65, 4294901760
    %433 = vmatpush.msra.mxu0 %v432
    %v434 = vand.u32 %v64, 4294901760
    %435 = vmatpush.msra.mxu0 %v434
    %v436 = vand.u32 %v63, 4294901760
    %437 = vmatpush.msra.mxu0 %v436
    %v438 = vand.u32 %v62, 4294901760
    %439 = vmatpush.msra.mxu0 %v438
    %v440 = vand.u32 %v61, 4294901760
    %441 = vmatpush.msra.mxu0 %v440
    %v442 = vand.u32 %v60, 4294901760
    %443 = vmatpush.msra.mxu0 %v442
    %v444 = vand.u32 %v59, 4294901760
    %445 = vmatpush.msra.mxu0 %v444
    %v446 = vand.u32 %v58, 4294901760
    %447 = vmatpush.msra.mxu0 %v446
    %v448 = vand.u32 %v57, 4294901760
    %449 = vmatpush.msra.mxu0 %v448
    %v450 = vand.u32 %v56, 4294901760
    %451 = vmatpush.msra.mxu0 %v450
    %v452 = vand.u32 %v55, 4294901760
    %453 = vmatpush.msra.mxu0 %v452
    %v454 = vand.u32 %v210, 4294901760
    %v455 = vsub.f32 %v210, %v454
    %v456 = vand.u32 %v455, 4294901760
    %457 = vmatmul.f32.gmra.mxu0 %v456
    %v458 = vpop.f32.mrf.mxu0
    %v459 = vadd.f32 %v420, %v458
    %460 = vdwg.mxu0
    %v461 = vand.u32 %v70, 4294901760
    %v462 = vsub.f32 %v70, %v461
    %v463 = vand.u32 %v462, 4294901760
    %464 = vmatpush.msra.mxu0 %v463
    %v465 = vand.u32 %v69, 4294901760
    %v466 = vsub.f32 %v69, %v465
    %v467 = vand.u32 %v466, 4294901760
    %468 = vmatpush.msra.mxu0 %v467
    %v469 = vand.u32 %v68, 4294901760
    %v470 = vsub.f32 %v68, %v469
    %v471 = vand.u32 %v470, 4294901760
    %472 = vmatpush.msra.mxu0 %v471
    %v473 = vand.u32 %v67, 4294901760
    %v474 = vsub.f32 %v67, %v473
    %v475 = vand.u32 %v474, 4294901760
    %476 = vmatpush.msra.mxu0 %v475
    %v477 = vand.u32 %v66, 4294901760
    %v478 = vsub.f32 %v66, %v477
    %v479 = vand.u32 %v478, 4294901760
    %480 = vmatpush.msra.mxu0 %v479
    %v481 = vand.u32 %v65, 4294901760
    %v482 = vsub.f32 %v65, %v481
    %v483 = vand.u32 %v482, 4294901760
    %484 = vmatpush.msra.mxu0 %v483
    %v485 = vand.u32 %v64, 4294901760
    %v486 = vsub.f32 %v64, %v485
    %v487 = vand.u32 %v486, 4294901760
    %488 = vmatpush.msra.mxu0 %v487
    %v489 = vand.u32 %v63, 4294901760
    %v490 = vsub.f32 %v63, %v489
    %v491 = vand.u32 %v490, 4294901760
    %492 = vmatpush.msra.mxu0 %v491
    %v493 = vand.u32 %v62, 4294901760
    %v494 = vsub.f32 %v62, %v493
    %v495 = vand.u32 %v494, 4294901760
    %496 = vmatpush.msra.mxu0 %v495
    %v497 = vand.u32 %v61, 4294901760
    %v498 = vsub.f32 %v61, %v497
    %v499 = vand.u32 %v498, 4294901760
    %500 = vmatpush.msra.mxu0 %v499
    %v501 = vand.u32 %v60, 4294901760
    %v502 = vsub.f32 %v60, %v501
    %v503 = vand.u32 %v502, 4294901760
    %504 = vmatpush.msra.mxu0 %v503
    %v505 = vand.u32 %v59, 4294901760
    %v506 = vsub.f32 %v59, %v505
    %v507 = vand.u32 %v506, 4294901760
    %508 = vmatpush.msra.mxu0 %v507
    %v509 = vand.u32 %v58, 4294901760
    %v510 = vsub.f32 %v58, %v509
    %v511 = vand.u32 %v510, 4294901760
    %512 = vmatpush.msra.mxu0 %v511
    %v513 = vand.u32 %v57, 4294901760
    %v514 = vsub.f32 %v57, %v513
    %v515 = vand.u32 %v514, 4294901760
    %516 = vmatpush.msra.mxu0 %v515
    %v517 = vand.u32 %v56, 4294901760
    %v518 = vsub.f32 %v56, %v517
    %v519 = vand.u32 %v518, 4294901760
    %520 = vmatpush.msra.mxu0 %v519
    %v521 = vand.u32 %v55, 4294901760
    %v522 = vsub.f32 %v55, %v521
    %v523 = vand.u32 %v522, 4294901760
    %524 = vmatpush.msra.mxu0 %v523
    %v525 = vand.u32 %v210, 4294901760
    %526 = vmatmul.f32.gmra.mxu0 %v525
    %v527 = vpop.f32.mrf.mxu0
    %v528 = vadd.f32 %v459, %v527
    %529 = vdwg.mxu0
    %v530 = vand.u32 %v70, 4294901760
    %531 = vmatpush.msra.mxu0 %v530
    %v532 = vand.u32 %v69, 4294901760
    %533 = vmatpush.msra.mxu0 %v532
    %v534 = vand.u32 %v68, 4294901760
    %535 = vmatpush.msra.mxu0 %v534
    %v536 = vand.u32 %v67, 4294901760
    %537 = vmatpush.msra.mxu0 %v536
    %v538 = vand.u32 %v66, 4294901760
    %539 = vmatpush.msra.mxu0 %v538
    %v540 = vand.u32 %v65, 4294901760
    %541 = vmatpush.msra.mxu0 %v540
    %v542 = vand.u32 %v64, 4294901760
    %543 = vmatpush.msra.mxu0 %v542
    %v544 = vand.u32 %v63, 4294901760
    %545 = vmatpush.msra.mxu0 %v544
    %v546 = vand.u32 %v62, 4294901760
    %547 = vmatpush.msra.mxu0 %v546
    %v548 = vand.u32 %v61, 4294901760
    %549 = vmatpush.msra.mxu0 %v548
    %v550 = vand.u32 %v60, 4294901760
    %551 = vmatpush.msra.mxu0 %v550
    %v552 = vand.u32 %v59, 4294901760
    %553 = vmatpush.msra.mxu0 %v552
    %v554 = vand.u32 %v58, 4294901760
    %555 = vmatpush.msra.mxu0 %v554
    %v556 = vand.u32 %v57, 4294901760
    %557 = vmatpush.msra.mxu0 %v556
    %v558 = vand.u32 %v56, 4294901760
    %559 = vmatpush.msra.mxu0 %v558
    %v560 = vand.u32 %v55, 4294901760
    %561 = vmatpush.msra.mxu0 %v560
    %v562 = vand.u32 %v210, 4294901760
    %563 = vmatmul.f32.gmra.mxu0 %v562
    %v564 = vpop.f32.mrf.mxu0
    %v565 = vadd.f32 %v528, %v564
    %566 = vdwg.mxu0
    %v567 = vand.u32 %v86, 4294901760
    %568 = vmatpush.msra.mxu0 %v567
    %v569 = vand.u32 %v85, 4294901760
    %570 = vmatpush.msra.mxu0 %v569
    %v571 = vand.u32 %v84, 4294901760
    %572 = vmatpush.msra.mxu0 %v571
    %v573 = vand.u32 %v83, 4294901760
    %574 = vmatpush.msra.mxu0 %v573
    %v575 = vand.u32 %v82, 4294901760
    %576 = vmatpush.msra.mxu0 %v575
    %v577 = vand.u32 %v81, 4294901760
    %578 = vmatpush.msra.mxu0 %v577
    %v579 = vand.u32 %v80, 4294901760
    %580 = vmatpush.msra.mxu0 %v579
    %v581 = vand.u32 %v79, 4294901760
    %582 = vmatpush.msra.mxu0 %v581
    %v583 = vand.u32 %v78, 4294901760
    %584 = vmatpush.msra.mxu0 %v583
    %v585 = vand.u32 %v77, 4294901760
    %586 = vmatpush.msra.mxu0 %v585
    %v587 = vand.u32 %v76, 4294901760
    %588 = vmatpush.msra.mxu0 %v587
    %v589 = vand.u32 %v75, 4294901760
    %590 = vmatpush.msra.mxu0 %v589
    %v591 = vand.u32 %v74, 4294901760
    %592 = vmatpush.msra.mxu0 %v591
    %v593 = vand.u32 %v73, 4294901760
    %594 = vmatpush.msra.mxu0 %v593
    %v595 = vand.u32 %v72, 4294901760
    %596 = vmatpush.msra.mxu0 %v595
    %v597 = vand.u32 %v71, 4294901760
    %598 = vmatpush.msra.mxu0 %v597
    %v599 = vand.u32 %v211, 4294901760
    %v600 = vsub.f32 %v211, %v599
    %v601 = vand.u32 %v600, 4294901760
    %v602 = vsub.f32 %v600, %v601
    %v603 = vand.u32 %v602, 4294901760
    %604 = vmatmul.f32.gmra.mxu0 %v603
    %v605 = vpop.f32.mrf.mxu0
    %v606 = vadd.f32 %v565, %v605
    %607 = vdwg.mxu0
    %v608 = vand.u32 %v86, 4294901760
    %v609 = vsub.f32 %v86, %v608
    %v610 = vand.u32 %v609, 4294901760
    %v611 = vsub.f32 %v609, %v610
    %v612 = vand.u32 %v611, 4294901760
    %613 = vmatpush.msra.mxu0 %v612
    %v614 = vand.u32 %v85, 4294901760
    %v615 = vsub.f32 %v85, %v614
    %v616 = vand.u32 %v615, 4294901760
    %v617 = vsub.f32 %v615, %v616
    %v618 = vand.u32 %v617, 4294901760
    %619 = vmatpush.msra.mxu0 %v618
    %v620 = vand.u32 %v84, 4294901760
    %v621 = vsub.f32 %v84, %v620
    %v622 = vand.u32 %v621, 4294901760
    %v623 = vsub.f32 %v621, %v622
    %v624 = vand.u32 %v623, 4294901760
    %625 = vmatpush.msra.mxu0 %v624
    %v626 = vand.u32 %v83, 4294901760
    %v627 = vsub.f32 %v83, %v626
    %v628 = vand.u32 %v627, 4294901760
    %v629 = vsub.f32 %v627, %v628
    %v630 = vand.u32 %v629, 4294901760
    %631 = vmatpush.msra.mxu0 %v630
    %v632 = vand.u32 %v82, 4294901760
    %v633 = vsub.f32 %v82, %v632
    %v634 = vand.u32 %v633, 4294901760
    %v635 = vsub.f32 %v633, %v634
    %v636 = vand.u32 %v635, 4294901760
    %637 = vmatpush.msra.mxu0 %v636
    %v638 = vand.u32 %v81, 4294901760
    %v639 = vsub.f32 %v81, %v638
    %v640 = vand.u32 %v639, 4294901760
    %v641 = vsub.f32 %v639, %v640
    %v642 = vand.u32 %v641, 4294901760
    %643 = vmatpush.msra.mxu0 %v642
    %v644 = vand.u32 %v80, 4294901760
    %v645 = vsub.f32 %v80, %v644
    %v646 = vand.u32 %v645, 4294901760
    %v647 = vsub.f32 %v645, %v646
    %v648 = vand.u32 %v647, 4294901760
    %649 = vmatpush.msra.mxu0 %v648
    %v650 = vand.u32 %v79, 4294901760
    %v651 = vsub.f32 %v79, %v650
    %v652 = vand.u32 %v651, 4294901760
    %v653 = vsub.f32 %v651, %v652
    %v654 = vand.u32 %v653, 4294901760
    %655 = vmatpush.msra.mxu0 %v654
    %v656 = vand.u32 %v78, 4294901760
    %v657 = vsub.f32 %v78, %v656
    %v658 = vand.u32 %v657, 4294901760
    %v659 = vsub.f32 %v657, %v658
    %v660 = vand.u32 %v659, 4294901760
    %661 = vmatpush.msra.mxu0 %v660
    %v662 = vand.u32 %v77, 4294901760
    %v663 = vsub.f32 %v77, %v662
    %v664 = vand.u32 %v663, 4294901760
    %v665 = vsub.f32 %v663, %v664
    %v666 = vand.u32 %v665, 4294901760
    %667 = vmatpush.msra.mxu0 %v666
    %v668 = vand.u32 %v76, 4294901760
    %v669 = vsub.f32 %v76, %v668
    %v670 = vand.u32 %v669, 4294901760
    %v671 = vsub.f32 %v669, %v670
    %v672 = vand.u32 %v671, 4294901760
    %673 = vmatpush.msra.mxu0 %v672
    %v674 = vand.u32 %v75, 4294901760
    %v675 = vsub.f32 %v75, %v674
    %v676 = vand.u32 %v675, 4294901760
    %v677 = vsub.f32 %v675, %v676
    %v678 = vand.u32 %v677, 4294901760
    %679 = vmatpush.msra.mxu0 %v678
    %v680 = vand.u32 %v74, 4294901760
    %v681 = vsub.f32 %v74, %v680
    %v682 = vand.u32 %v681, 4294901760
    %v683 = vsub.f32 %v681, %v682
    %v684 = vand.u32 %v683, 4294901760
    %685 = vmatpush.msra.mxu0 %v684
    %v686 = vand.u32 %v73, 4294901760
    %v687 = vsub.f32 %v73, %v686
    %v688 = vand.u32 %v687, 4294901760
    %v689 = vsub.f32 %v687, %v688
    %v690 = vand.u32 %v689, 4294901760
    %691 = vmatpush.msra.mxu0 %v690
    %v692 = vand.u32 %v72, 4294901760
    %v693 = vsub.f32 %v72, %v692
    %v694 = vand.u32 %v693, 4294901760
    %v695 = vsub.f32 %v693, %v694
    %v696 = vand.u32 %v695, 4294901760
    %697 = vmatpush.msra.mxu0 %v696
    %v698 = vand.u32 %v71, 4294901760
    %v699 = vsub.f32 %v71, %v698
    %v700 = vand.u32 %v699, 4294901760
    %v701 = vsub.f32 %v699, %v700
    %v702 = vand.u32 %v701, 4294901760
    %703 = vmatpush.msra.mxu0 %v702
    %v704 = vand.u32 %v211, 4294901760
    %705 = vmatmul.f32.gmra.mxu0 %v704
    %v706 = vpop.f32.mrf.mxu0
    %v707 = vadd.f32 %v606, %v706
    %708 = vdwg.mxu0
    %v709 = vand.u32 %v86, 4294901760
    %v710 = vsub.f32 %v86, %v709
    %711 = vmatpush.msra.mxu0 %v710
    %v712 = vand.u32 %v85, 4294901760
    %v713 = vsub.f32 %v85, %v712
    %714 = vmatpush.msra.mxu0 %v713
    %v715 = vand.u32 %v84, 4294901760
    %v716 = vsub.f32 %v84, %v715
    %717 = vmatpush.msra.mxu0 %v716
    %v718 = vand.u32 %v83, 4294901760
    %v719 = vsub.f32 %v83, %v718
    %720 = vmatpush.msra.mxu0 %v719
    %v721 = vand.u32 %v82, 4294901760
    %v722 = vsub.f32 %v82, %v721
    %723 = vmatpush.msra.mxu0 %v722
    %v724 = vand.u32 %v81, 4294901760
    %v725 = vsub.f32 %v81, %v724
    %726 = vmatpush.msra.mxu0 %v725
    %v727 = vand.u32 %v80, 4294901760
    %v728 = vsub.f32 %v80, %v727
    %729 = vmatpush.msra.mxu0 %v728
    %v730 = vand.u32 %v79, 4294901760
    %v731 = vsub.f32 %v79, %v730
    %732 = vmatpush.msra.mxu0 %v731
    %v733 = vand.u32 %v78, 4294901760
    %v734 = vsub.f32 %v78, %v733
    %735 = vmatpush.msra.mxu0 %v734
    %v736 = vand.u32 %v77, 4294901760
    %v737 = vsub.f32 %v77, %v736
    %738 = vmatpush.msra.mxu0 %v737
    %v739 = vand.u32 %v76, 4294901760
    %v740 = vsub.f32 %v76, %v739
    %741 = vmatpush.msra.mxu0 %v740
    %v742 = vand.u32 %v75, 4294901760
    %v743 = vsub.f32 %v75, %v742
    %744 = vmatpush.msra.mxu0 %v743
    %v745 = vand.u32 %v74, 4294901760
    %v746 = vsub.f32 %v74, %v745
    %747 = vmatpush.msra.mxu0 %v746
    %v748 = vand.u32 %v73, 4294901760
    %v749 = vsub.f32 %v73, %v748
    %750 = vmatpush.msra.mxu0 %v749
    %v751 = vand.u32 %v72, 4294901760
    %v752 = vsub.f32 %v72, %v751
    %753 = vmatpush.msra.mxu0 %v752
    %v754 = vand.u32 %v71, 4294901760
    %v755 = vsub.f32 %v71, %v754
    %756 = vmatpush.msra.mxu0 %v755
    %v757 = vand.u32 %v211, 4294901760
    %v758 = vsub.f32 %v211, %v757
    %759 = vmatmul.f32.gmra.mxu0 %v758
    %v760 = vpop.f32.mrf.mxu0
    %v761 = vadd.f32 %v707, %v760
    %762 = vdwg.mxu0
    %v763 = vand.u32 %v86, 4294901760
    %764 = vmatpush.msra.mxu0 %v763
    %v765 = vand.u32 %v85, 4294901760
    %766 = vmatpush.msra.mxu0 %v765
    %v767 = vand.u32 %v84, 4294901760
    %768 = vmatpush.msra.mxu0 %v767
    %v769 = vand.u32 %v83, 4294901760
    %770 = vmatpush.msra.mxu0 %v769
    %v771 = vand.u32 %v82, 4294901760
    %772 = vmatpush.msra.mxu0 %v771
    %v773 = vand.u32 %v81, 4294901760
    %774 = vmatpush.msra.mxu0 %v773
    %v775 = vand.u32 %v80, 4294901760
    %776 = vmatpush.msra.mxu0 %v775
    %v777 = vand.u32 %v79, 4294901760
    %778 = vmatpush.msra.mxu0 %v777
    %v779 = vand.u32 %v78, 4294901760
    %780 = vmatpush.msra.mxu0 %v779
    %v781 = vand.u32 %v77, 4294901760
    %782 = vmatpush.msra.mxu0 %v781
    %v783 = vand.u32 %v76, 4294901760
    %784 = vmatpush.msra.mxu0 %v783
    %v785 = vand.u32 %v75, 4294901760
    %786 = vmatpush.msra.mxu0 %v785
    %v787 = vand.u32 %v74, 4294901760
    %788 = vmatpush.msra.mxu0 %v787
    %v789 = vand.u32 %v73, 4294901760
    %790 = vmatpush.msra.mxu0 %v789
    %v791 = vand.u32 %v72, 4294901760
    %792 = vmatpush.msra.mxu0 %v791
    %v793 = vand.u32 %v71, 4294901760
    %794 = vmatpush.msra.mxu0 %v793
    %v795 = vand.u32 %v211, 4294901760
    %v796 = vsub.f32 %v211, %v795
    %v797 = vand.u32 %v796, 4294901760
    %798 = vmatmul.f32.gmra.mxu0 %v797
    %v799 = vpop.f32.mrf.mxu0
    %v800 = vadd.f32 %v761, %v799
    %801 = vdwg.mxu0
    %v802 = vand.u32 %v86, 4294901760
    %v803 = vsub.f32 %v86, %v802
    %v804 = vand.u32 %v803, 4294901760
    %805 = vmatpush.msra.mxu0 %v804
    %v806 = vand.u32 %v85, 4294901760
    %v807 = vsub.f32 %v85, %v806
    %v808 = vand.u32 %v807, 4294901760
    %809 = vmatpush.msra.mxu0 %v808
    %v810 = vand.u32 %v84, 4294901760
    %v811 = vsub.f32 %v84, %v810
    %v812 = vand.u32 %v811, 4294901760
    %813 = vmatpush.msra.mxu0 %v812
    %v814 = vand.u32 %v83, 4294901760
    %v815 = vsub.f32 %v83, %v814
    %v816 = vand.u32 %v815, 4294901760
    %817 = vmatpush.msra.mxu0 %v816
    %v818 = vand.u32 %v82, 4294901760
    %v819 = vsub.f32 %v82, %v818
    %v820 = vand.u32 %v819, 4294901760
    %821 = vmatpush.msra.mxu0 %v820
    %v822 = vand.u32 %v81, 4294901760
    %v823 = vsub.f32 %v81, %v822
    %v824 = vand.u32 %v823, 4294901760
    %825 = vmatpush.msra.mxu0 %v824
    %v826 = vand.u32 %v80, 4294901760
    %v827 = vsub.f32 %v80, %v826
    %v828 = vand.u32 %v827, 4294901760
    %829 = vmatpush.msra.mxu0 %v828
    %v830 = vand.u32 %v79, 4294901760
    %v831 = vsub.f32 %v79, %v830
    %v832 = vand.u32 %v831, 4294901760
    %833 = vmatpush.msra.mxu0 %v832
    %v834 = vand.u32 %v78, 4294901760
    %v835 = vsub.f32 %v78, %v834
    %v836 = vand.u32 %v835, 4294901760
    %837 = vmatpush.msra.mxu0 %v836
    %v838 = vand.u32 %v77, 4294901760
    %v839 = vsub.f32 %v77, %v838
    %v840 = vand.u32 %v839, 4294901760
    %841 = vmatpush.msra.mxu0 %v840
    %v842 = vand.u32 %v76, 4294901760
    %v843 = vsub.f32 %v76, %v842
    %v844 = vand.u32 %v843, 4294901760
    %845 = vmatpush.msra.mxu0 %v844
    %v846 = vand.u32 %v75, 4294901760
    %v847 = vsub.f32 %v75, %v846
    %v848 = vand.u32 %v847, 4294901760
    %849 = vmatpush.msra.mxu0 %v848
    %v850 = vand.u32 %v74, 4294901760
    %v851 = vsub.f32 %v74, %v850
    %v852 = vand.u32 %v851, 4294901760
    %853 = vmatpush.msra.mxu0 %v852
    %v854 = vand.u32 %v73, 4294901760
    %v855 = vsub.f32 %v73, %v854
    %v856 = vand.u32 %v855, 4294901760
    %857 = vmatpush.msra.mxu0 %v856
    %v858 = vand.u32 %v72, 4294901760
    %v859 = vsub.f32 %v72, %v858
    %v860 = vand.u32 %v859, 4294901760
    %861 = vmatpush.msra.mxu0 %v860
    %v862 = vand.u32 %v71, 4294901760
    %v863 = vsub.f32 %v71, %v862
    %v864 = vand.u32 %v863, 4294901760
    %865 = vmatpush.msra.mxu0 %v864
    %v866 = vand.u32 %v211, 4294901760
    %867 = vmatmul.f32.gmra.mxu0 %v866
    %v868 = vpop.f32.mrf.mxu0
    %v869 = vadd.f32 %v800, %v868
    %870 = vdwg.mxu0
    %v871 = vand.u32 %v86, 4294901760
    %872 = vmatpush.msra.mxu0 %v871
    %v873 = vand.u32 %v85, 4294901760
    %874 = vmatpush.msra.mxu0 %v873
    %v875 = vand.u32 %v84, 4294901760
    %876 = vmatpush.msra.mxu0 %v875
    %v877 = vand.u32 %v83, 4294901760
    %878 = vmatpush.msra.mxu0 %v877
    %v879 = vand.u32 %v82, 4294901760
    %880 = vmatpush.msra.mxu0 %v879
    %v881 = vand.u32 %v81, 4294901760
    %882 = vmatpush.msra.mxu0 %v881
    %v883 = vand.u32 %v80, 4294901760
    %884 = vmatpush.msra.mxu0 %v883
    %v885 = vand.u32 %v79, 4294901760
    %886 = vmatpush.msra.mxu0 %v885
    %v887 = vand.u32 %v78, 4294901760
    %888 = vmatpush.msra.mxu0 %v887
    %v889 = vand.u32 %v77, 4294901760
    %890 = vmatpush.msra.mxu0 %v889
    %v891 = vand.u32 %v76, 4294901760
    %892 = vmatpush.msra.mxu0 %v891
    %v893 = vand.u32 %v75, 4294901760
    %894 = vmatpush.msra.mxu0 %v893
    %v895 = vand.u32 %v74, 4294901760
    %896 = vmatpush.msra.mxu0 %v895
    %v897 = vand.u32 %v73, 4294901760
    %898 = vmatpush.msra.mxu0 %v897
    %v899 = vand.u32 %v72, 4294901760
    %900 = vmatpush.msra.mxu0 %v899
    %v901 = vand.u32 %v71, 4294901760
    %902 = vmatpush.msra.mxu0 %v901
    %v903 = vand.u32 %v211, 4294901760
    %904 = vmatmul.f32.gmra.mxu0 %v903
    %v905 = vpop.f32.mrf.mxu0
    %v906 = vadd.f32 %v869, %v905
    %907 = vdwg.mxu0
    %v908 = vand.u32 %v102, 4294901760
    %909 = vmatpush.msra.mxu0 %v908
    %v910 = vand.u32 %v101, 4294901760
    %911 = vmatpush.msra.mxu0 %v910
    %v912 = vand.u32 %v100, 4294901760
    %913 = vmatpush.msra.mxu0 %v912
    %v914 = vand.u32 %v99, 4294901760
    %915 = vmatpush.msra.mxu0 %v914
    %v916 = vand.u32 %v98, 4294901760
    %917 = vmatpush.msra.mxu0 %v916
    %v918 = vand.u32 %v97, 4294901760
    %919 = vmatpush.msra.mxu0 %v918
    %v920 = vand.u32 %v96, 4294901760
    %921 = vmatpush.msra.mxu0 %v920
    %v922 = vand.u32 %v95, 4294901760
    %923 = vmatpush.msra.mxu0 %v922
    %v924 = vand.u32 %v94, 4294901760
    %925 = vmatpush.msra.mxu0 %v924
    %v926 = vand.u32 %v93, 4294901760
    %927 = vmatpush.msra.mxu0 %v926
    %v928 = vand.u32 %v92, 4294901760
    %929 = vmatpush.msra.mxu0 %v928
    %v930 = vand.u32 %v91, 4294901760
    %931 = vmatpush.msra.mxu0 %v930
    %v932 = vand.u32 %v90, 4294901760
    %933 = vmatpush.msra.mxu0 %v932
    %v934 = vand.u32 %v89, 4294901760
    %935 = vmatpush.msra.mxu0 %v934
    %v936 = vand.u32 %v88, 4294901760
    %937 = vmatpush.msra.mxu0 %v936
    %v938 = vand.u32 %v87, 4294901760
    %939 = vmatpush.msra.mxu0 %v938
    %v940 = vand.u32 %v212, 4294901760
    %v941 = vsub.f32 %v212, %v940
    %v942 = vand.u32 %v941, 4294901760
    %v943 = vsub.f32 %v941, %v942
    %v944 = vand.u32 %v943, 4294901760
    %945 = vmatmul.f32.gmra.mxu0 %v944
    %v946 = vpop.f32.mrf.mxu0
    %v947 = vadd.f32 %v906, %v946
    %948 = vdwg.mxu0
    %v949 = vand.u32 %v102, 4294901760
    %v950 = vsub.f32 %v102, %v949
    %v951 = vand.u32 %v950, 4294901760
    %v952 = vsub.f32 %v950, %v951
    %v953 = vand.u32 %v952, 4294901760
    %954 = vmatpush.msra.mxu0 %v953
    %v955 = vand.u32 %v101, 4294901760
    %v956 = vsub.f32 %v101, %v955
    %v957 = vand.u32 %v956, 4294901760
    %v958 = vsub.f32 %v956, %v957
    %v959 = vand.u32 %v958, 4294901760
    %960 = vmatpush.msra.mxu0 %v959
    %v961 = vand.u32 %v100, 4294901760
    %v962 = vsub.f32 %v100, %v961
    %v963 = vand.u32 %v962, 4294901760
    %v964 = vsub.f32 %v962, %v963
    %v965 = vand.u32 %v964, 4294901760
    %966 = vmatpush.msra.mxu0 %v965
    %v967 = vand.u32 %v99, 4294901760
    %v968 = vsub.f32 %v99, %v967
    %v969 = vand.u32 %v968, 4294901760
    %v970 = vsub.f32 %v968, %v969
    %v971 = vand.u32 %v970, 4294901760
    %972 = vmatpush.msra.mxu0 %v971
    %v973 = vand.u32 %v98, 4294901760
    %v974 = vsub.f32 %v98, %v973
    %v975 = vand.u32 %v974, 4294901760
    %v976 = vsub.f32 %v974, %v975
    %v977 = vand.u32 %v976, 4294901760
    %978 = vmatpush.msra.mxu0 %v977
    %v979 = vand.u32 %v97, 4294901760
    %v980 = vsub.f32 %v97, %v979
    %v981 = vand.u32 %v980, 4294901760
    %v982 = vsub.f32 %v980, %v981
    %v983 = vand.u32 %v982, 4294901760
    %984 = vmatpush.msra.mxu0 %v983
    %v985 = vand.u32 %v96, 4294901760
    %v986 = vsub.f32 %v96, %v985
    %v987 = vand.u32 %v986, 4294901760
    %v988 = vsub.f32 %v986, %v987
    %v989 = vand.u32 %v988, 4294901760
    %990 = vmatpush.msra.mxu0 %v989
    %v991 = vand.u32 %v95, 4294901760
    %v992 = vsub.f32 %v95, %v991
    %v993 = vand.u32 %v992, 4294901760
    %v994 = vsub.f32 %v992, %v993
    %v995 = vand.u32 %v994, 4294901760
    %996 = vmatpush.msra.mxu0 %v995
    %v997 = vand.u32 %v94, 4294901760
    %v998 = vsub.f32 %v94, %v997
    %v999 = vand.u32 %v998, 4294901760
    %v1000 = vsub.f32 %v998, %v999
    %v1001 = vand.u32 %v1000, 4294901760
    %1002 = vmatpush.msra.mxu0 %v1001
    %v1003 = vand.u32 %v93, 4294901760
    %v1004 = vsub.f32 %v93, %v1003
    %v1005 = vand.u32 %v1004, 4294901760
    %v1006 = vsub.f32 %v1004, %v1005
    %v1007 = vand.u32 %v1006, 4294901760
    %1008 = vmatpush.msra.mxu0 %v1007
    %v1009 = vand.u32 %v92, 4294901760
    %v1010 = vsub.f32 %v92, %v1009
    %v1011 = vand.u32 %v1010, 4294901760
    %v1012 = vsub.f32 %v1010, %v1011
    %v1013 = vand.u32 %v1012, 4294901760
    %1014 = vmatpush.msra.mxu0 %v1013
    %v1015 = vand.u32 %v91, 4294901760
    %v1016 = vsub.f32 %v91, %v1015
    %v1017 = vand.u32 %v1016, 4294901760
    %v1018 = vsub.f32 %v1016, %v1017
    %v1019 = vand.u32 %v1018, 4294901760
    %1020 = vmatpush.msra.mxu0 %v1019
    %v1021 = vand.u32 %v90, 4294901760
    %v1022 = vsub.f32 %v90, %v1021
    %v1023 = vand.u32 %v1022, 4294901760
    %v1024 = vsub.f32 %v1022, %v1023
    %v1025 = vand.u32 %v1024, 4294901760
    %1026 = vmatpush.msra.mxu0 %v1025
    %v1027 = vand.u32 %v89, 4294901760
    %v1028 = vsub.f32 %v89, %v1027
    %v1029 = vand.u32 %v1028, 4294901760
    %v1030 = vsub.f32 %v1028, %v1029
    %v1031 = vand.u32 %v1030, 4294901760
    %1032 = vmatpush.msra.mxu0 %v1031
    %v1033 = vand.u32 %v88, 4294901760
    %v1034 = vsub.f32 %v88, %v1033
    %v1035 = vand.u32 %v1034, 4294901760
    %v1036 = vsub.f32 %v1034, %v1035
    %v1037 = vand.u32 %v1036, 4294901760
    %1038 = vmatpush.msra.mxu0 %v1037
    %v1039 = vand.u32 %v87, 4294901760
    %v1040 = vsub.f32 %v87, %v1039
    %v1041 = vand.u32 %v1040, 4294901760
    %v1042 = vsub.f32 %v1040, %v1041
    %v1043 = vand.u32 %v1042, 4294901760
    %1044 = vmatpush.msra.mxu0 %v1043
    %v1045 = vand.u32 %v212, 4294901760
    %1046 = vmatmul.f32.gmra.mxu0 %v1045
    %v1047 = vpop.f32.mrf.mxu0
    %v1048 = vadd.f32 %v947, %v1047
    %1049 = vdwg.mxu0
    %v1050 = vand.u32 %v102, 4294901760
    %v1051 = vsub.f32 %v102, %v1050
    %1052 = vmatpush.msra.mxu0 %v1051
    %v1053 = vand.u32 %v101, 4294901760
    %v1054 = vsub.f32 %v101, %v1053
    %1055 = vmatpush.msra.mxu0 %v1054
    %v1056 = vand.u32 %v100, 4294901760
    %v1057 = vsub.f32 %v100, %v1056
    %1058 = vmatpush.msra.mxu0 %v1057
    %v1059 = vand.u32 %v99, 4294901760
    %v1060 = vsub.f32 %v99, %v1059
    %1061 = vmatpush.msra.mxu0 %v1060
    %v1062 = vand.u32 %v98, 4294901760
    %v1063 = vsub.f32 %v98, %v1062
    %1064 = vmatpush.msra.mxu0 %v1063
    %v1065 = vand.u32 %v97, 4294901760
    %v1066 = vsub.f32 %v97, %v1065
    %1067 = vmatpush.msra.mxu0 %v1066
    %v1068 = vand.u32 %v96, 4294901760
    %v1069 = vsub.f32 %v96, %v1068
    %1070 = vmatpush.msra.mxu0 %v1069
    %v1071 = vand.u32 %v95, 4294901760
    %v1072 = vsub.f32 %v95, %v1071
    %1073 = vmatpush.msra.mxu0 %v1072
    %v1074 = vand.u32 %v94, 4294901760
    %v1075 = vsub.f32 %v94, %v1074
    %1076 = vmatpush.msra.mxu0 %v1075
    %v1077 = vand.u32 %v93, 4294901760
    %v1078 = vsub.f32 %v93, %v1077
    %1079 = vmatpush.msra.mxu0 %v1078
    %v1080 = vand.u32 %v92, 4294901760
    %v1081 = vsub.f32 %v92, %v1080
    %1082 = vmatpush.msra.mxu0 %v1081
    %v1083 = vand.u32 %v91, 4294901760
    %v1084 = vsub.f32 %v91, %v1083
    %1085 = vmatpush.msra.mxu0 %v1084
    %v1086 = vand.u32 %v90, 4294901760
    %v1087 = vsub.f32 %v90, %v1086
    %1088 = vmatpush.msra.mxu0 %v1087
    %v1089 = vand.u32 %v89, 4294901760
    %v1090 = vsub.f32 %v89, %v1089
    %1091 = vmatpush.msra.mxu0 %v1090
    %v1092 = vand.u32 %v88, 4294901760
    %v1093 = vsub.f32 %v88, %v1092
    %1094 = vmatpush.msra.mxu0 %v1093
    %v1095 = vand.u32 %v87, 4294901760
    %v1096 = vsub.f32 %v87, %v1095
    %1097 = vmatpush.msra.mxu0 %v1096
    %v1098 = vand.u32 %v212, 4294901760
    %v1099 = vsub.f32 %v212, %v1098
    %1100 = vmatmul.f32.gmra.mxu0 %v1099
    %v1101 = vpop.f32.mrf.mxu0
    %v1102 = vadd.f32 %v1048, %v1101
    %1103 = vdwg.mxu0
    %v1104 = vand.u32 %v102, 4294901760
    %1105 = vmatpush.msra.mxu0 %v1104
    %v1106 = vand.u32 %v101, 4294901760
    %1107 = vmatpush.msra.mxu0 %v1106
    %v1108 = vand.u32 %v100, 4294901760
    %1109 = vmatpush.msra.mxu0 %v1108
    %v1110 = vand.u32 %v99, 4294901760
    %1111 = vmatpush.msra.mxu0 %v1110
    %v1112 = vand.u32 %v98, 4294901760
    %1113 = vmatpush.msra.mxu0 %v1112
    %v1114 = vand.u32 %v97, 4294901760
    %1115 = vmatpush.msra.mxu0 %v1114
    %v1116 = vand.u32 %v96, 4294901760
    %1117 = vmatpush.msra.mxu0 %v1116
    %v1118 = vand.u32 %v95, 4294901760
    %1119 = vmatpush.msra.mxu0 %v1118
    %v1120 = vand.u32 %v94, 4294901760
    %1121 = vmatpush.msra.mxu0 %v1120
    %v1122 = vand.u32 %v93, 4294901760
    %1123 = vmatpush.msra.mxu0 %v1122
    %v1124 = vand.u32 %v92, 4294901760
    %1125 = vmatpush.msra.mxu0 %v1124
    %v1126 = vand.u32 %v91, 4294901760
    %1127 = vmatpush.msra.mxu0 %v1126
    %v1128 = vand.u32 %v90, 4294901760
    %1129 = vmatpush.msra.mxu0 %v1128
    %v1130 = vand.u32 %v89, 4294901760
    %1131 = vmatpush.msra.mxu0 %v1130
    %v1132 = vand.u32 %v88, 4294901760
    %1133 = vmatpush.msra.mxu0 %v1132
    %v1134 = vand.u32 %v87, 4294901760
    %1135 = vmatpush.msra.mxu0 %v1134
    %v1136 = vand.u32 %v212, 4294901760
    %v1137 = vsub.f32 %v212, %v1136
    %v1138 = vand.u32 %v1137, 4294901760
    %1139 = vmatmul.f32.gmra.mxu0 %v1138
    %v1140 = vpop.f32.mrf.mxu0
    %v1141 = vadd.f32 %v1102, %v1140
    %1142 = vdwg.mxu0
    %v1143 = vand.u32 %v102, 4294901760
    %v1144 = vsub.f32 %v102, %v1143
    %v1145 = vand.u32 %v1144, 4294901760
    %1146 = vmatpush.msra.mxu0 %v1145
    %v1147 = vand.u32 %v101, 4294901760
    %v1148 = vsub.f32 %v101, %v1147
    %v1149 = vand.u32 %v1148, 4294901760
    %1150 = vmatpush.msra.mxu0 %v1149
    %v1151 = vand.u32 %v100, 4294901760
    %v1152 = vsub.f32 %v100, %v1151
    %v1153 = vand.u32 %v1152, 4294901760
    %1154 = vmatpush.msra.mxu0 %v1153
    %v1155 = vand.u32 %v99, 4294901760
    %v1156 = vsub.f32 %v99, %v1155
    %v1157 = vand.u32 %v1156, 4294901760
    %1158 = vmatpush.msra.mxu0 %v1157
    %v1159 = vand.u32 %v98, 4294901760
    %v1160 = vsub.f32 %v98, %v1159
    %v1161 = vand.u32 %v1160, 4294901760
    %1162 = vmatpush.msra.mxu0 %v1161
    %v1163 = vand.u32 %v97, 4294901760
    %v1164 = vsub.f32 %v97, %v1163
    %v1165 = vand.u32 %v1164, 4294901760
    %1166 = vmatpush.msra.mxu0 %v1165
    %v1167 = vand.u32 %v96, 4294901760
    %v1168 = vsub.f32 %v96, %v1167
    %v1169 = vand.u32 %v1168, 4294901760
    %1170 = vmatpush.msra.mxu0 %v1169
    %v1171 = vand.u32 %v95, 4294901760
    %v1172 = vsub.f32 %v95, %v1171
    %v1173 = vand.u32 %v1172, 4294901760
    %1174 = vmatpush.msra.mxu0 %v1173
    %v1175 = vand.u32 %v94, 4294901760
    %v1176 = vsub.f32 %v94, %v1175
    %v1177 = vand.u32 %v1176, 4294901760
    %1178 = vmatpush.msra.mxu0 %v1177
    %v1179 = vand.u32 %v93, 4294901760
    %v1180 = vsub.f32 %v93, %v1179
    %v1181 = vand.u32 %v1180, 4294901760
    %1182 = vmatpush.msra.mxu0 %v1181
    %v1183 = vand.u32 %v92, 4294901760
    %v1184 = vsub.f32 %v92, %v1183
    %v1185 = vand.u32 %v1184, 4294901760
    %1186 = vmatpush.msra.mxu0 %v1185
    %v1187 = vand.u32 %v91, 4294901760
    %v1188 = vsub.f32 %v91, %v1187
    %v1189 = vand.u32 %v1188, 4294901760
    %1190 = vmatpush.msra.mxu0 %v1189
    %v1191 = vand.u32 %v90, 4294901760
    %v1192 = vsub.f32 %v90, %v1191
    %v1193 = vand.u32 %v1192, 4294901760
    %1194 = vmatpush.msra.mxu0 %v1193
    %v1195 = vand.u32 %v89, 4294901760
    %v1196 = vsub.f32 %v89, %v1195
    %v1197 = vand.u32 %v1196, 4294901760
    %1198 = vmatpush.msra.mxu0 %v1197
    %v1199 = vand.u32 %v88, 4294901760
    %v1200 = vsub.f32 %v88, %v1199
    %v1201 = vand.u32 %v1200, 4294901760
    %1202 = vmatpush.msra.mxu0 %v1201
    %v1203 = vand.u32 %v87, 4294901760
    %v1204 = vsub.f32 %v87, %v1203
    %v1205 = vand.u32 %v1204, 4294901760
    %1206 = vmatpush.msra.mxu0 %v1205
    %v1207 = vand.u32 %v212, 4294901760
    %1208 = vmatmul.f32.gmra.mxu0 %v1207
    %v1209 = vpop.f32.mrf.mxu0
    %v1210 = vadd.f32 %v1141, %v1209
    %1211 = vdwg.mxu0
    %v1212 = vand.u32 %v102, 4294901760
    %1213 = vmatpush.msra.mxu0 %v1212
    %v1214 = vand.u32 %v101, 4294901760
    %1215 = vmatpush.msra.mxu0 %v1214
    %v1216 = vand.u32 %v100, 4294901760
    %1217 = vmatpush.msra.mxu0 %v1216
    %v1218 = vand.u32 %v99, 4294901760
    %1219 = vmatpush.msra.mxu0 %v1218
    %v1220 = vand.u32 %v98, 4294901760
    %1221 = vmatpush.msra.mxu0 %v1220
    %v1222 = vand.u32 %v97, 4294901760
    %1223 = vmatpush.msra.mxu0 %v1222
    %v1224 = vand.u32 %v96, 4294901760
    %1225 = vmatpush.msra.mxu0 %v1224
    %v1226 = vand.u32 %v95, 4294901760
    %1227 = vmatpush.msra.mxu0 %v1226
    %v1228 = vand.u32 %v94, 4294901760
    %1229 = vmatpush.msra.mxu0 %v1228
    %v1230 = vand.u32 %v93, 4294901760
    %1231 = vmatpush.msra.mxu0 %v1230
    %v1232 = vand.u32 %v92, 4294901760
    %1233 = vmatpush.msra.mxu0 %v1232
    %v1234 = vand.u32 %v91, 4294901760
    %1235 = vmatpush.msra.mxu0 %v1234
    %v1236 = vand.u32 %v90, 4294901760
    %1237 = vmatpush.msra.mxu0 %v1236
    %v1238 = vand.u32 %v89, 4294901760
    %1239 = vmatpush.msra.mxu0 %v1238
    %v1240 = vand.u32 %v88, 4294901760
    %1241 = vmatpush.msra.mxu0 %v1240
    %v1242 = vand.u32 %v87, 4294901760
    %1243 = vmatpush.msra.mxu0 %v1242
    %v1244 = vand.u32 %v212, 4294901760
    %1245 = vmatmul.f32.gmra.mxu0 %v1244
    %v1246 = vpop.f32.mrf.mxu0
    %v1247 = vadd.f32 %v1210, %v1246
    %1248 = vdwg.mxu0
    %v1249 = vand.u32 %v118, 4294901760
    %1250 = vmatpush.msra.mxu0 %v1249
    %v1251 = vand.u32 %v117, 4294901760
    %1252 = vmatpush.msra.mxu0 %v1251
    %v1253 = vand.u32 %v116, 4294901760
    %1254 = vmatpush.msra.mxu0 %v1253
    %v1255 = vand.u32 %v115, 4294901760
    %1256 = vmatpush.msra.mxu0 %v1255
    %v1257 = vand.u32 %v114, 4294901760
    %1258 = vmatpush.msra.mxu0 %v1257
    %v1259 = vand.u32 %v113, 4294901760
    %1260 = vmatpush.msra.mxu0 %v1259
    %v1261 = vand.u32 %v112, 4294901760
    %1262 = vmatpush.msra.mxu0 %v1261
    %v1263 = vand.u32 %v111, 4294901760
    %1264 = vmatpush.msra.mxu0 %v1263
    %v1265 = vand.u32 %v110, 4294901760
    %1266 = vmatpush.msra.mxu0 %v1265
    %v1267 = vand.u32 %v109, 4294901760
    %1268 = vmatpush.msra.mxu0 %v1267
    %v1269 = vand.u32 %v108, 4294901760
    %1270 = vmatpush.msra.mxu0 %v1269
    %v1271 = vand.u32 %v107, 4294901760
    %1272 = vmatpush.msra.mxu0 %v1271
    %v1273 = vand.u32 %v106, 4294901760
    %1274 = vmatpush.msra.mxu0 %v1273
    %v1275 = vand.u32 %v105, 4294901760
    %1276 = vmatpush.msra.mxu0 %v1275
    %v1277 = vand.u32 %v104, 4294901760
    %1278 = vmatpush.msra.mxu0 %v1277
    %v1279 = vand.u32 %v103, 4294901760
    %1280 = vmatpush.msra.mxu0 %v1279
    %v1281 = vand.u32 %v213, 4294901760
    %v1282 = vsub.f32 %v213, %v1281
    %v1283 = vand.u32 %v1282, 4294901760
    %v1284 = vsub.f32 %v1282, %v1283
    %v1285 = vand.u32 %v1284, 4294901760
    %1286 = vmatmul.f32.gmra.mxu0 %v1285
    %v1287 = vpop.f32.mrf.mxu0
    %v1288 = vadd.f32 %v1247, %v1287
    %1289 = vdwg.mxu0
    %v1290 = vand.u32 %v118, 4294901760
    %v1291 = vsub.f32 %v118, %v1290
    %v1292 = vand.u32 %v1291, 4294901760
    %v1293 = vsub.f32 %v1291, %v1292
    %v1294 = vand.u32 %v1293, 4294901760
    %1295 = vmatpush.msra.mxu0 %v1294
    %v1296 = vand.u32 %v117, 4294901760
    %v1297 = vsub.f32 %v117, %v1296
    %v1298 = vand.u32 %v1297, 4294901760
    %v1299 = vsub.f32 %v1297, %v1298
    %v1300 = vand.u32 %v1299, 4294901760
    %1301 = vmatpush.msra.mxu0 %v1300
    %v1302 = vand.u32 %v116, 4294901760
    %v1303 = vsub.f32 %v116, %v1302
    %v1304 = vand.u32 %v1303, 4294901760
    %v1305 = vsub.f32 %v1303, %v1304
    %v1306 = vand.u32 %v1305, 4294901760
    %1307 = vmatpush.msra.mxu0 %v1306
    %v1308 = vand.u32 %v115, 4294901760
    %v1309 = vsub.f32 %v115, %v1308
    %v1310 = vand.u32 %v1309, 4294901760
    %v1311 = vsub.f32 %v1309, %v1310
    %v1312 = vand.u32 %v1311, 4294901760
    %1313 = vmatpush.msra.mxu0 %v1312
    %v1314 = vand.u32 %v114, 4294901760
    %v1315 = vsub.f32 %v114, %v1314
    %v1316 = vand.u32 %v1315, 4294901760
    %v1317 = vsub.f32 %v1315, %v1316
    %v1318 = vand.u32 %v1317, 4294901760
    %1319 = vmatpush.msra.mxu0 %v1318
    %v1320 = vand.u32 %v113, 4294901760
    %v1321 = vsub.f32 %v113, %v1320
    %v1322 = vand.u32 %v1321, 4294901760
    %v1323 = vsub.f32 %v1321, %v1322
    %v1324 = vand.u32 %v1323, 4294901760
    %1325 = vmatpush.msra.mxu0 %v1324
    %v1326 = vand.u32 %v112, 4294901760
    %v1327 = vsub.f32 %v112, %v1326
    %v1328 = vand.u32 %v1327, 4294901760
    %v1329 = vsub.f32 %v1327, %v1328
    %v1330 = vand.u32 %v1329, 4294901760
    %1331 = vmatpush.msra.mxu0 %v1330
    %v1332 = vand.u32 %v111, 4294901760
    %v1333 = vsub.f32 %v111, %v1332
    %v1334 = vand.u32 %v1333, 4294901760
    %v1335 = vsub.f32 %v1333, %v1334
    %v1336 = vand.u32 %v1335, 4294901760
    %1337 = vmatpush.msra.mxu0 %v1336
    %v1338 = vand.u32 %v110, 4294901760
    %v1339 = vsub.f32 %v110, %v1338
    %v1340 = vand.u32 %v1339, 4294901760
    %v1341 = vsub.f32 %v1339, %v1340
    %v1342 = vand.u32 %v1341, 4294901760
    %1343 = vmatpush.msra.mxu0 %v1342
    %v1344 = vand.u32 %v109, 4294901760
    %v1345 = vsub.f32 %v109, %v1344
    %v1346 = vand.u32 %v1345, 4294901760
    %v1347 = vsub.f32 %v1345, %v1346
    %v1348 = vand.u32 %v1347, 4294901760
    %1349 = vmatpush.msra.mxu0 %v1348
    %v1350 = vand.u32 %v108, 4294901760
    %v1351 = vsub.f32 %v108, %v1350
    %v1352 = vand.u32 %v1351, 4294901760
    %v1353 = vsub.f32 %v1351, %v1352
    %v1354 = vand.u32 %v1353, 4294901760
    %1355 = vmatpush.msra.mxu0 %v1354
    %v1356 = vand.u32 %v107, 4294901760
    %v1357 = vsub.f32 %v107, %v1356
    %v1358 = vand.u32 %v1357, 4294901760
    %v1359 = vsub.f32 %v1357, %v1358
    %v1360 = vand.u32 %v1359, 4294901760
    %1361 = vmatpush.msra.mxu0 %v1360
    %v1362 = vand.u32 %v106, 4294901760
    %v1363 = vsub.f32 %v106, %v1362
    %v1364 = vand.u32 %v1363, 4294901760
    %v1365 = vsub.f32 %v1363, %v1364
    %v1366 = vand.u32 %v1365, 4294901760
    %1367 = vmatpush.msra.mxu0 %v1366
    %v1368 = vand.u32 %v105, 4294901760
    %v1369 = vsub.f32 %v105, %v1368
    %v1370 = vand.u32 %v1369, 4294901760
    %v1371 = vsub.f32 %v1369, %v1370
    %v1372 = vand.u32 %v1371, 4294901760
    %1373 = vmatpush.msra.mxu0 %v1372
    %v1374 = vand.u32 %v104, 4294901760
    %v1375 = vsub.f32 %v104, %v1374
    %v1376 = vand.u32 %v1375, 4294901760
    %v1377 = vsub.f32 %v1375, %v1376
    %v1378 = vand.u32 %v1377, 4294901760
    %1379 = vmatpush.msra.mxu0 %v1378
    %v1380 = vand.u32 %v103, 4294901760
    %v1381 = vsub.f32 %v103, %v1380
    %v1382 = vand.u32 %v1381, 4294901760
    %v1383 = vsub.f32 %v1381, %v1382
    %v1384 = vand.u32 %v1383, 4294901760
    %1385 = vmatpush.msra.mxu0 %v1384
    %v1386 = vand.u32 %v213, 4294901760
    %1387 = vmatmul.f32.gmra.mxu0 %v1386
    %v1388 = vpop.f32.mrf.mxu0
    %v1389 = vadd.f32 %v1288, %v1388
    %1390 = vdwg.mxu0
    %v1391 = vand.u32 %v118, 4294901760
    %v1392 = vsub.f32 %v118, %v1391
    %1393 = vmatpush.msra.mxu0 %v1392
    %v1394 = vand.u32 %v117, 4294901760
    %v1395 = vsub.f32 %v117, %v1394
    %1396 = vmatpush.msra.mxu0 %v1395
    %v1397 = vand.u32 %v116, 4294901760
    %v1398 = vsub.f32 %v116, %v1397
    %1399 = vmatpush.msra.mxu0 %v1398
    %v1400 = vand.u32 %v115, 4294901760
    %v1401 = vsub.f32 %v115, %v1400
    %1402 = vmatpush.msra.mxu0 %v1401
    %v1403 = vand.u32 %v114, 4294901760
    %v1404 = vsub.f32 %v114, %v1403
    %1405 = vmatpush.msra.mxu0 %v1404
    %v1406 = vand.u32 %v113, 4294901760
    %v1407 = vsub.f32 %v113, %v1406
    %1408 = vmatpush.msra.mxu0 %v1407
    %v1409 = vand.u32 %v112, 4294901760
    %v1410 = vsub.f32 %v112, %v1409
    %1411 = vmatpush.msra.mxu0 %v1410
    %v1412 = vand.u32 %v111, 4294901760
    %v1413 = vsub.f32 %v111, %v1412
    %1414 = vmatpush.msra.mxu0 %v1413
    %v1415 = vand.u32 %v110, 4294901760
    %v1416 = vsub.f32 %v110, %v1415
    %1417 = vmatpush.msra.mxu0 %v1416
    %v1418 = vand.u32 %v109, 4294901760
    %v1419 = vsub.f32 %v109, %v1418
    %1420 = vmatpush.msra.mxu0 %v1419
    %v1421 = vand.u32 %v108, 4294901760
    %v1422 = vsub.f32 %v108, %v1421
    %1423 = vmatpush.msra.mxu0 %v1422
    %v1424 = vand.u32 %v107, 4294901760
    %v1425 = vsub.f32 %v107, %v1424
    %1426 = vmatpush.msra.mxu0 %v1425
    %v1427 = vand.u32 %v106, 4294901760
    %v1428 = vsub.f32 %v106, %v1427
    %1429 = vmatpush.msra.mxu0 %v1428
    %v1430 = vand.u32 %v105, 4294901760
    %v1431 = vsub.f32 %v105, %v1430
    %1432 = vmatpush.msra.mxu0 %v1431
    %v1433 = vand.u32 %v104, 4294901760
    %v1434 = vsub.f32 %v104, %v1433
    %1435 = vmatpush.msra.mxu0 %v1434
    %v1436 = vand.u32 %v103, 4294901760
    %v1437 = vsub.f32 %v103, %v1436
    %1438 = vmatpush.msra.mxu0 %v1437
    %v1439 = vand.u32 %v213, 4294901760
    %v1440 = vsub.f32 %v213, %v1439
    %1441 = vmatmul.f32.gmra.mxu0 %v1440
    %v1442 = vpop.f32.mrf.mxu0
    %v1443 = vadd.f32 %v1389, %v1442
    %1444 = vdwg.mxu0
    %v1445 = vand.u32 %v118, 4294901760
    %1446 = vmatpush.msra.mxu0 %v1445
    %v1447 = vand.u32 %v117, 4294901760
    %1448 = vmatpush.msra.mxu0 %v1447
    %v1449 = vand.u32 %v116, 4294901760
    %1450 = vmatpush.msra.mxu0 %v1449
    %v1451 = vand.u32 %v115, 4294901760
    %1452 = vmatpush.msra.mxu0 %v1451
    %v1453 = vand.u32 %v114, 4294901760
    %1454 = vmatpush.msra.mxu0 %v1453
    %v1455 = vand.u32 %v113, 4294901760
    %1456 = vmatpush.msra.mxu0 %v1455
    %v1457 = vand.u32 %v112, 4294901760
    %1458 = vmatpush.msra.mxu0 %v1457
    %v1459 = vand.u32 %v111, 4294901760
    %1460 = vmatpush.msra.mxu0 %v1459
    %v1461 = vand.u32 %v110, 4294901760
    %1462 = vmatpush.msra.mxu0 %v1461
    %v1463 = vand.u32 %v109, 4294901760
    %1464 = vmatpush.msra.mxu0 %v1463
    %v1465 = vand.u32 %v108, 4294901760
    %1466 = vmatpush.msra.mxu0 %v1465
    %v1467 = vand.u32 %v107, 4294901760
    %1468 = vmatpush.msra.mxu0 %v1467
    %v1469 = vand.u32 %v106, 4294901760
    %1470 = vmatpush.msra.mxu0 %v1469
    %v1471 = vand.u32 %v105, 4294901760
    %1472 = vmatpush.msra.mxu0 %v1471
    %v1473 = vand.u32 %v104, 4294901760
    %1474 = vmatpush.msra.mxu0 %v1473
    %v1475 = vand.u32 %v103, 4294901760
    %1476 = vmatpush.msra.mxu0 %v1475
    %v1477 = vand.u32 %v213, 4294901760
    %v1478 = vsub.f32 %v213, %v1477
    %v1479 = vand.u32 %v1478, 4294901760
    %1480 = vmatmul.f32.gmra.mxu0 %v1479
    %v1481 = vpop.f32.mrf.mxu0
    %v1482 = vadd.f32 %v1443, %v1481
    %1483 = vdwg.mxu0
    %v1484 = vand.u32 %v118, 4294901760
    %v1485 = vsub.f32 %v118, %v1484
    %v1486 = vand.u32 %v1485, 4294901760
    %1487 = vmatpush.msra.mxu0 %v1486
    %v1488 = vand.u32 %v117, 4294901760
    %v1489 = vsub.f32 %v117, %v1488
    %v1490 = vand.u32 %v1489, 4294901760
    %1491 = vmatpush.msra.mxu0 %v1490
    %v1492 = vand.u32 %v116, 4294901760
    %v1493 = vsub.f32 %v116, %v1492
    %v1494 = vand.u32 %v1493, 4294901760
    %1495 = vmatpush.msra.mxu0 %v1494
    %v1496 = vand.u32 %v115, 4294901760
    %v1497 = vsub.f32 %v115, %v1496
    %v1498 = vand.u32 %v1497, 4294901760
    %1499 = vmatpush.msra.mxu0 %v1498
    %v1500 = vand.u32 %v114, 4294901760
    %v1501 = vsub.f32 %v114, %v1500
    %v1502 = vand.u32 %v1501, 4294901760
    %1503 = vmatpush.msra.mxu0 %v1502
    %v1504 = vand.u32 %v113, 4294901760
    %v1505 = vsub.f32 %v113, %v1504
    %v1506 = vand.u32 %v1505, 4294901760
    %1507 = vmatpush.msra.mxu0 %v1506
    %v1508 = vand.u32 %v112, 4294901760
    %v1509 = vsub.f32 %v112, %v1508
    %v1510 = vand.u32 %v1509, 4294901760
    %1511 = vmatpush.msra.mxu0 %v1510
    %v1512 = vand.u32 %v111, 4294901760
    %v1513 = vsub.f32 %v111, %v1512
    %v1514 = vand.u32 %v1513, 4294901760
    %1515 = vmatpush.msra.mxu0 %v1514
    %v1516 = vand.u32 %v110, 4294901760
    %v1517 = vsub.f32 %v110, %v1516
    %v1518 = vand.u32 %v1517, 4294901760
    %1519 = vmatpush.msra.mxu0 %v1518
    %v1520 = vand.u32 %v109, 4294901760
    %v1521 = vsub.f32 %v109, %v1520
    %v1522 = vand.u32 %v1521, 4294901760
    %1523 = vmatpush.msra.mxu0 %v1522
    %v1524 = vand.u32 %v108, 4294901760
    %v1525 = vsub.f32 %v108, %v1524
    %v1526 = vand.u32 %v1525, 4294901760
    %1527 = vmatpush.msra.mxu0 %v1526
    %v1528 = vand.u32 %v107, 4294901760
    %v1529 = vsub.f32 %v107, %v1528
    %v1530 = vand.u32 %v1529, 4294901760
    %1531 = vmatpush.msra.mxu0 %v1530
    %v1532 = vand.u32 %v106, 4294901760
    %v1533 = vsub.f32 %v106, %v1532
    %v1534 = vand.u32 %v1533, 4294901760
    %1535 = vmatpush.msra.mxu0 %v1534
    %v1536 = vand.u32 %v105, 4294901760
    %v1537 = vsub.f32 %v105, %v1536
    %v1538 = vand.u32 %v1537, 4294901760
    %1539 = vmatpush.msra.mxu0 %v1538
    %v1540 = vand.u32 %v104, 4294901760
    %v1541 = vsub.f32 %v104, %v1540
    %v1542 = vand.u32 %v1541, 4294901760
    %1543 = vmatpush.msra.mxu0 %v1542
    %v1544 = vand.u32 %v103, 4294901760
    %v1545 = vsub.f32 %v103, %v1544
    %v1546 = vand.u32 %v1545, 4294901760
    %1547 = vmatpush.msra.mxu0 %v1546
    %v1548 = vand.u32 %v213, 4294901760
    %1549 = vmatmul.f32.gmra.mxu0 %v1548
    %v1550 = vpop.f32.mrf.mxu0
    %v1551 = vadd.f32 %v1482, %v1550
    %1552 = vdwg.mxu0
    %v1553 = vand.u32 %v118, 4294901760
    %1554 = vmatpush.msra.mxu0 %v1553
    %v1555 = vand.u32 %v117, 4294901760
    %1556 = vmatpush.msra.mxu0 %v1555
    %v1557 = vand.u32 %v116, 4294901760
    %1558 = vmatpush.msra.mxu0 %v1557
    %v1559 = vand.u32 %v115, 4294901760
    %1560 = vmatpush.msra.mxu0 %v1559
    %v1561 = vand.u32 %v114, 4294901760
    %1562 = vmatpush.msra.mxu0 %v1561
    %v1563 = vand.u32 %v113, 4294901760
    %1564 = vmatpush.msra.mxu0 %v1563
    %v1565 = vand.u32 %v112, 4294901760
    %1566 = vmatpush.msra.mxu0 %v1565
    %v1567 = vand.u32 %v111, 4294901760
    %1568 = vmatpush.msra.mxu0 %v1567
    %v1569 = vand.u32 %v110, 4294901760
    %1570 = vmatpush.msra.mxu0 %v1569
    %v1571 = vand.u32 %v109, 4294901760
    %1572 = vmatpush.msra.mxu0 %v1571
    %v1573 = vand.u32 %v108, 4294901760
    %1574 = vmatpush.msra.mxu0 %v1573
    %v1575 = vand.u32 %v107, 4294901760
    %1576 = vmatpush.msra.mxu0 %v1575
    %v1577 = vand.u32 %v106, 4294901760
    %1578 = vmatpush.msra.mxu0 %v1577
    %v1579 = vand.u32 %v105, 4294901760
    %1580 = vmatpush.msra.mxu0 %v1579
    %v1581 = vand.u32 %v104, 4294901760
    %1582 = vmatpush.msra.mxu0 %v1581
    %v1583 = vand.u32 %v103, 4294901760
    %1584 = vmatpush.msra.mxu0 %v1583
    %v1585 = vand.u32 %v213, 4294901760
    %1586 = vmatmul.f32.gmra.mxu0 %v1585
    %v1587 = vpop.f32.mrf.mxu0
    %v1588 = vadd.f32 %v1551, %v1587
    %1589 = vdwg.mxu0
    %v1590 = vand.u32 %v134, 4294901760
    %1591 = vmatpush.msra.mxu0 %v1590
    %v1592 = vand.u32 %v133, 4294901760
    %1593 = vmatpush.msra.mxu0 %v1592
    %v1594 = vand.u32 %v132, 4294901760
    %1595 = vmatpush.msra.mxu0 %v1594
    %v1596 = vand.u32 %v131, 4294901760
    %1597 = vmatpush.msra.mxu0 %v1596
    %v1598 = vand.u32 %v130, 4294901760
    %1599 = vmatpush.msra.mxu0 %v1598
    %v1600 = vand.u32 %v129, 4294901760
    %1601 = vmatpush.msra.mxu0 %v1600
    %v1602 = vand.u32 %v128, 4294901760
    %1603 = vmatpush.msra.mxu0 %v1602
    %v1604 = vand.u32 %v127, 4294901760
    %1605 = vmatpush.msra.mxu0 %v1604
    %v1606 = vand.u32 %v126, 4294901760
    %1607 = vmatpush.msra.mxu0 %v1606
    %v1608 = vand.u32 %v125, 4294901760
    %1609 = vmatpush.msra.mxu0 %v1608
    %v1610 = vand.u32 %v124, 4294901760
    %1611 = vmatpush.msra.mxu0 %v1610
    %v1612 = vand.u32 %v123, 4294901760
    %1613 = vmatpush.msra.mxu0 %v1612
    %v1614 = vand.u32 %v122, 4294901760
    %1615 = vmatpush.msra.mxu0 %v1614
    %v1616 = vand.u32 %v121, 4294901760
    %1617 = vmatpush.msra.mxu0 %v1616
    %v1618 = vand.u32 %v120, 4294901760
    %1619 = vmatpush.msra.mxu0 %v1618
    %v1620 = vand.u32 %v119, 4294901760
    %1621 = vmatpush.msra.mxu0 %v1620
    %v1622 = vand.u32 %v214, 4294901760
    %v1623 = vsub.f32 %v214, %v1622
    %v1624 = vand.u32 %v1623, 4294901760
    %v1625 = vsub.f32 %v1623, %v1624
    %v1626 = vand.u32 %v1625, 4294901760
    %1627 = vmatmul.f32.gmra.mxu0 %v1626
    %v1628 = vpop.f32.mrf.mxu0
    %v1629 = vadd.f32 %v1588, %v1628
    %1630 = vdwg.mxu0
    %v1631 = vand.u32 %v134, 4294901760
    %v1632 = vsub.f32 %v134, %v1631
    %v1633 = vand.u32 %v1632, 4294901760
    %v1634 = vsub.f32 %v1632, %v1633
    %v1635 = vand.u32 %v1634, 4294901760
    %1636 = vmatpush.msra.mxu0 %v1635
    %v1637 = vand.u32 %v133, 4294901760
    %v1638 = vsub.f32 %v133, %v1637
    %v1639 = vand.u32 %v1638, 4294901760
    %v1640 = vsub.f32 %v1638, %v1639
    %v1641 = vand.u32 %v1640, 4294901760
    %1642 = vmatpush.msra.mxu0 %v1641
    %v1643 = vand.u32 %v132, 4294901760
    %v1644 = vsub.f32 %v132, %v1643
    %v1645 = vand.u32 %v1644, 4294901760
    %v1646 = vsub.f32 %v1644, %v1645
    %v1647 = vand.u32 %v1646, 4294901760
    %1648 = vmatpush.msra.mxu0 %v1647
    %v1649 = vand.u32 %v131, 4294901760
    %v1650 = vsub.f32 %v131, %v1649
    %v1651 = vand.u32 %v1650, 4294901760
    %v1652 = vsub.f32 %v1650, %v1651
    %v1653 = vand.u32 %v1652, 4294901760
    %1654 = vmatpush.msra.mxu0 %v1653
    %v1655 = vand.u32 %v130, 4294901760
    %v1656 = vsub.f32 %v130, %v1655
    %v1657 = vand.u32 %v1656, 4294901760
    %v1658 = vsub.f32 %v1656, %v1657
    %v1659 = vand.u32 %v1658, 4294901760
    %1660 = vmatpush.msra.mxu0 %v1659
    %v1661 = vand.u32 %v129, 4294901760
    %v1662 = vsub.f32 %v129, %v1661
    %v1663 = vand.u32 %v1662, 4294901760
    %v1664 = vsub.f32 %v1662, %v1663
    %v1665 = vand.u32 %v1664, 4294901760
    %1666 = vmatpush.msra.mxu0 %v1665
    %v1667 = vand.u32 %v128, 4294901760
    %v1668 = vsub.f32 %v128, %v1667
    %v1669 = vand.u32 %v1668, 4294901760
    %v1670 = vsub.f32 %v1668, %v1669
    %v1671 = vand.u32 %v1670, 4294901760
    %1672 = vmatpush.msra.mxu0 %v1671
    %v1673 = vand.u32 %v127, 4294901760
    %v1674 = vsub.f32 %v127, %v1673
    %v1675 = vand.u32 %v1674, 4294901760
    %v1676 = vsub.f32 %v1674, %v1675
    %v1677 = vand.u32 %v1676, 4294901760
    %1678 = vmatpush.msra.mxu0 %v1677
    %v1679 = vand.u32 %v126, 4294901760
    %v1680 = vsub.f32 %v126, %v1679
    %v1681 = vand.u32 %v1680, 4294901760
    %v1682 = vsub.f32 %v1680, %v1681
    %v1683 = vand.u32 %v1682, 4294901760
    %1684 = vmatpush.msra.mxu0 %v1683
    %v1685 = vand.u32 %v125, 4294901760
    %v1686 = vsub.f32 %v125, %v1685
    %v1687 = vand.u32 %v1686, 4294901760
    %v1688 = vsub.f32 %v1686, %v1687
    %v1689 = vand.u32 %v1688, 4294901760
    %1690 = vmatpush.msra.mxu0 %v1689
    %v1691 = vand.u32 %v124, 4294901760
    %v1692 = vsub.f32 %v124, %v1691
    %v1693 = vand.u32 %v1692, 4294901760
    %v1694 = vsub.f32 %v1692, %v1693
    %v1695 = vand.u32 %v1694, 4294901760
    %1696 = vmatpush.msra.mxu0 %v1695
    %v1697 = vand.u32 %v123, 4294901760
    %v1698 = vsub.f32 %v123, %v1697
    %v1699 = vand.u32 %v1698, 4294901760
    %v1700 = vsub.f32 %v1698, %v1699
    %v1701 = vand.u32 %v1700, 4294901760
    %1702 = vmatpush.msra.mxu0 %v1701
    %v1703 = vand.u32 %v122, 4294901760
    %v1704 = vsub.f32 %v122, %v1703
    %v1705 = vand.u32 %v1704, 4294901760
    %v1706 = vsub.f32 %v1704, %v1705
    %v1707 = vand.u32 %v1706, 4294901760
    %1708 = vmatpush.msra.mxu0 %v1707
    %v1709 = vand.u32 %v121, 4294901760
    %v1710 = vsub.f32 %v121, %v1709
    %v1711 = vand.u32 %v1710, 4294901760
    %v1712 = vsub.f32 %v1710, %v1711
    %v1713 = vand.u32 %v1712, 4294901760
    %1714 = vmatpush.msra.mxu0 %v1713
    %v1715 = vand.u32 %v120, 4294901760
    %v1716 = vsub.f32 %v120, %v1715
    %v1717 = vand.u32 %v1716, 4294901760
    %v1718 = vsub.f32 %v1716, %v1717
    %v1719 = vand.u32 %v1718, 4294901760
    %1720 = vmatpush.msra.mxu0 %v1719
    %v1721 = vand.u32 %v119, 4294901760
    %v1722 = vsub.f32 %v119, %v1721
    %v1723 = vand.u32 %v1722, 4294901760
    %v1724 = vsub.f32 %v1722, %v1723
    %v1725 = vand.u32 %v1724, 4294901760
    %1726 = vmatpush.msra.mxu0 %v1725
    %v1727 = vand.u32 %v214, 4294901760
    %1728 = vmatmul.f32.gmra.mxu0 %v1727
    %v1729 = vpop.f32.mrf.mxu0
    %v1730 = vadd.f32 %v1629, %v1729
    %1731 = vdwg.mxu0
    %v1732 = vand.u32 %v134, 4294901760
    %v1733 = vsub.f32 %v134, %v1732
    %1734 = vmatpush.msra.mxu0 %v1733
    %v1735 = vand.u32 %v133, 4294901760
    %v1736 = vsub.f32 %v133, %v1735
    %1737 = vmatpush.msra.mxu0 %v1736
    %v1738 = vand.u32 %v132, 4294901760
    %v1739 = vsub.f32 %v132, %v1738
    %1740 = vmatpush.msra.mxu0 %v1739
    %v1741 = vand.u32 %v131, 4294901760
    %v1742 = vsub.f32 %v131, %v1741
    %1743 = vmatpush.msra.mxu0 %v1742
    %v1744 = vand.u32 %v130, 4294901760
    %v1745 = vsub.f32 %v130, %v1744
    %1746 = vmatpush.msra.mxu0 %v1745
    %v1747 = vand.u32 %v129, 4294901760
    %v1748 = vsub.f32 %v129, %v1747
    %1749 = vmatpush.msra.mxu0 %v1748
    %v1750 = vand.u32 %v128, 4294901760
    %v1751 = vsub.f32 %v128, %v1750
    %1752 = vmatpush.msra.mxu0 %v1751
    %v1753 = vand.u32 %v127, 4294901760
    %v1754 = vsub.f32 %v127, %v1753
    %1755 = vmatpush.msra.mxu0 %v1754
    %v1756 = vand.u32 %v126, 4294901760
    %v1757 = vsub.f32 %v126, %v1756
    %1758 = vmatpush.msra.mxu0 %v1757
    %v1759 = vand.u32 %v125, 4294901760
    %v1760 = vsub.f32 %v125, %v1759
    %1761 = vmatpush.msra.mxu0 %v1760
    %v1762 = vand.u32 %v124, 4294901760
    %v1763 = vsub.f32 %v124, %v1762
    %1764 = vmatpush.msra.mxu0 %v1763
    %v1765 = vand.u32 %v123, 4294901760
    %v1766 = vsub.f32 %v123, %v1765
    %1767 = vmatpush.msra.mxu0 %v1766
    %v1768 = vand.u32 %v122, 4294901760
    %v1769 = vsub.f32 %v122, %v1768
    %1770 = vmatpush.msra.mxu0 %v1769
    %v1771 = vand.u32 %v121, 4294901760
    %v1772 = vsub.f32 %v121, %v1771
    %1773 = vmatpush.msra.mxu0 %v1772
    %v1774 = vand.u32 %v120, 4294901760
    %v1775 = vsub.f32 %v120, %v1774
    %1776 = vmatpush.msra.mxu0 %v1775
    %v1777 = vand.u32 %v119, 4294901760
    %v1778 = vsub.f32 %v119, %v1777
    %1779 = vmatpush.msra.mxu0 %v1778
    %v1780 = vand.u32 %v214, 4294901760
    %v1781 = vsub.f32 %v214, %v1780
    %1782 = vmatmul.f32.gmra.mxu0 %v1781
    %v1783 = vpop.f32.mrf.mxu0
    %v1784 = vadd.f32 %v1730, %v1783
    %1785 = vdwg.mxu0
    %v1786 = vand.u32 %v134, 4294901760
    %1787 = vmatpush.msra.mxu0 %v1786
    %v1788 = vand.u32 %v133, 4294901760
    %1789 = vmatpush.msra.mxu0 %v1788
    %v1790 = vand.u32 %v132, 4294901760
    %1791 = vmatpush.msra.mxu0 %v1790
    %v1792 = vand.u32 %v131, 4294901760
    %1793 = vmatpush.msra.mxu0 %v1792
    %v1794 = vand.u32 %v130, 4294901760
    %1795 = vmatpush.msra.mxu0 %v1794
    %v1796 = vand.u32 %v129, 4294901760
    %1797 = vmatpush.msra.mxu0 %v1796
    %v1798 = vand.u32 %v128, 4294901760
    %1799 = vmatpush.msra.mxu0 %v1798
    %v1800 = vand.u32 %v127, 4294901760
    %1801 = vmatpush.msra.mxu0 %v1800
    %v1802 = vand.u32 %v126, 4294901760
    %1803 = vmatpush.msra.mxu0 %v1802
    %v1804 = vand.u32 %v125, 4294901760
    %1805 = vmatpush.msra.mxu0 %v1804
    %v1806 = vand.u32 %v124, 4294901760
    %1807 = vmatpush.msra.mxu0 %v1806
    %v1808 = vand.u32 %v123, 4294901760
    %1809 = vmatpush.msra.mxu0 %v1808
    %v1810 = vand.u32 %v122, 4294901760
    %1811 = vmatpush.msra.mxu0 %v1810
    %v1812 = vand.u32 %v121, 4294901760
    %1813 = vmatpush.msra.mxu0 %v1812
    %v1814 = vand.u32 %v120, 4294901760
    %1815 = vmatpush.msra.mxu0 %v1814
    %v1816 = vand.u32 %v119, 4294901760
    %1817 = vmatpush.msra.mxu0 %v1816
    %v1818 = vand.u32 %v214, 4294901760
    %v1819 = vsub.f32 %v214, %v1818
    %v1820 = vand.u32 %v1819, 4294901760
    %1821 = vmatmul.f32.gmra.mxu0 %v1820
    %v1822 = vpop.f32.mrf.mxu0
    %v1823 = vadd.f32 %v1784, %v1822
    %1824 = vdwg.mxu0
    %v1825 = vand.u32 %v134, 4294901760
    %v1826 = vsub.f32 %v134, %v1825
    %v1827 = vand.u32 %v1826, 4294901760
    %1828 = vmatpush.msra.mxu0 %v1827
    %v1829 = vand.u32 %v133, 4294901760
    %v1830 = vsub.f32 %v133, %v1829
    %v1831 = vand.u32 %v1830, 4294901760
    %1832 = vmatpush.msra.mxu0 %v1831
    %v1833 = vand.u32 %v132, 4294901760
    %v1834 = vsub.f32 %v132, %v1833
    %v1835 = vand.u32 %v1834, 4294901760
    %1836 = vmatpush.msra.mxu0 %v1835
    %v1837 = vand.u32 %v131, 4294901760
    %v1838 = vsub.f32 %v131, %v1837
    %v1839 = vand.u32 %v1838, 4294901760
    %1840 = vmatpush.msra.mxu0 %v1839
    %v1841 = vand.u32 %v130, 4294901760
    %v1842 = vsub.f32 %v130, %v1841
    %v1843 = vand.u32 %v1842, 4294901760
    %1844 = vmatpush.msra.mxu0 %v1843
    %v1845 = vand.u32 %v129, 4294901760
    %v1846 = vsub.f32 %v129, %v1845
    %v1847 = vand.u32 %v1846, 4294901760
    %1848 = vmatpush.msra.mxu0 %v1847
    %v1849 = vand.u32 %v128, 4294901760
    %v1850 = vsub.f32 %v128, %v1849
    %v1851 = vand.u32 %v1850, 4294901760
    %1852 = vmatpush.msra.mxu0 %v1851
    %v1853 = vand.u32 %v127, 4294901760
    %v1854 = vsub.f32 %v127, %v1853
    %v1855 = vand.u32 %v1854, 4294901760
    %1856 = vmatpush.msra.mxu0 %v1855
    %v1857 = vand.u32 %v126, 4294901760
    %v1858 = vsub.f32 %v126, %v1857
    %v1859 = vand.u32 %v1858, 4294901760
    %1860 = vmatpush.msra.mxu0 %v1859
    %v1861 = vand.u32 %v125, 4294901760
    %v1862 = vsub.f32 %v125, %v1861
    %v1863 = vand.u32 %v1862, 4294901760
    %1864 = vmatpush.msra.mxu0 %v1863
    %v1865 = vand.u32 %v124, 4294901760
    %v1866 = vsub.f32 %v124, %v1865
    %v1867 = vand.u32 %v1866, 4294901760
    %1868 = vmatpush.msra.mxu0 %v1867
    %v1869 = vand.u32 %v123, 4294901760
    %v1870 = vsub.f32 %v123, %v1869
    %v1871 = vand.u32 %v1870, 4294901760
    %1872 = vmatpush.msra.mxu0 %v1871
    %v1873 = vand.u32 %v122, 4294901760
    %v1874 = vsub.f32 %v122, %v1873
    %v1875 = vand.u32 %v1874, 4294901760
    %1876 = vmatpush.msra.mxu0 %v1875
    %v1877 = vand.u32 %v121, 4294901760
    %v1878 = vsub.f32 %v121, %v1877
    %v1879 = vand.u32 %v1878, 4294901760
    %1880 = vmatpush.msra.mxu0 %v1879
    %v1881 = vand.u32 %v120, 4294901760
    %v1882 = vsub.f32 %v120, %v1881
    %v1883 = vand.u32 %v1882, 4294901760
    %1884 = vmatpush.msra.mxu0 %v1883
    %v1885 = vand.u32 %v119, 4294901760
    %v1886 = vsub.f32 %v119, %v1885
    %v1887 = vand.u32 %v1886, 4294901760
    %1888 = vmatpush.msra.mxu0 %v1887
    %v1889 = vand.u32 %v214, 4294901760
    %1890 = vmatmul.f32.gmra.mxu0 %v1889
    %v1891 = vpop.f32.mrf.mxu0
    %v1892 = vadd.f32 %v1823, %v1891
    %1893 = vdwg.mxu0
    %v1894 = vand.u32 %v134, 4294901760
    %1895 = vmatpush.msra.mxu0 %v1894
    %v1896 = vand.u32 %v133, 4294901760
    %1897 = vmatpush.msra.mxu0 %v1896
    %v1898 = vand.u32 %v132, 4294901760
    %1899 = vmatpush.msra.mxu0 %v1898
    %v1900 = vand.u32 %v131, 4294901760
    %1901 = vmatpush.msra.mxu0 %v1900
    %v1902 = vand.u32 %v130, 4294901760
    %1903 = vmatpush.msra.mxu0 %v1902
    %v1904 = vand.u32 %v129, 4294901760
    %1905 = vmatpush.msra.mxu0 %v1904
    %v1906 = vand.u32 %v128, 4294901760
    %1907 = vmatpush.msra.mxu0 %v1906
    %v1908 = vand.u32 %v127, 4294901760
    %1909 = vmatpush.msra.mxu0 %v1908
    %v1910 = vand.u32 %v126, 4294901760
    %1911 = vmatpush.msra.mxu0 %v1910
    %v1912 = vand.u32 %v125, 4294901760
    %1913 = vmatpush.msra.mxu0 %v1912
    %v1914 = vand.u32 %v124, 4294901760
    %1915 = vmatpush.msra.mxu0 %v1914
    %v1916 = vand.u32 %v123, 4294901760
    %1917 = vmatpush.msra.mxu0 %v1916
    %v1918 = vand.u32 %v122, 4294901760
    %1919 = vmatpush.msra.mxu0 %v1918
    %v1920 = vand.u32 %v121, 4294901760
    %1921 = vmatpush.msra.mxu0 %v1920
    %v1922 = vand.u32 %v120, 4294901760
    %1923 = vmatpush.msra.mxu0 %v1922
    %v1924 = vand.u32 %v119, 4294901760
    %1925 = vmatpush.msra.mxu0 %v1924
    %v1926 = vand.u32 %v214, 4294901760
    %1927 = vmatmul.f32.gmra.mxu0 %v1926
    %v1928 = vpop.f32.mrf.mxu0
    %v1929 = vadd.f32 %v1892, %v1928
    %1930 = vdwg.mxu0
    %v1931 = vand.u32 %v150, 4294901760
    %1932 = vmatpush.msra.mxu0 %v1931
    %v1933 = vand.u32 %v149, 4294901760
    %1934 = vmatpush.msra.mxu0 %v1933
    %v1935 = vand.u32 %v148, 4294901760
    %1936 = vmatpush.msra.mxu0 %v1935
    %v1937 = vand.u32 %v147, 4294901760
    %1938 = vmatpush.msra.mxu0 %v1937
    %v1939 = vand.u32 %v146, 4294901760
    %1940 = vmatpush.msra.mxu0 %v1939
    %v1941 = vand.u32 %v145, 4294901760
    %1942 = vmatpush.msra.mxu0 %v1941
    %v1943 = vand.u32 %v144, 4294901760
    %1944 = vmatpush.msra.mxu0 %v1943
    %v1945 = vand.u32 %v143, 4294901760
    %1946 = vmatpush.msra.mxu0 %v1945
    %v1947 = vand.u32 %v142, 4294901760
    %1948 = vmatpush.msra.mxu0 %v1947
    %v1949 = vand.u32 %v141, 4294901760
    %1950 = vmatpush.msra.mxu0 %v1949
    %v1951 = vand.u32 %v140, 4294901760
    %1952 = vmatpush.msra.mxu0 %v1951
    %v1953 = vand.u32 %v139, 4294901760
    %1954 = vmatpush.msra.mxu0 %v1953
    %v1955 = vand.u32 %v138, 4294901760
    %1956 = vmatpush.msra.mxu0 %v1955
    %v1957 = vand.u32 %v137, 4294901760
    %1958 = vmatpush.msra.mxu0 %v1957
    %v1959 = vand.u32 %v136, 4294901760
    %1960 = vmatpush.msra.mxu0 %v1959
    %v1961 = vand.u32 %v135, 4294901760
    %1962 = vmatpush.msra.mxu0 %v1961
    %v1963 = vand.u32 %v215, 4294901760
    %v1964 = vsub.f32 %v215, %v1963
    %v1965 = vand.u32 %v1964, 4294901760
    %v1966 = vsub.f32 %v1964, %v1965
    %v1967 = vand.u32 %v1966, 4294901760
    %1968 = vmatmul.f32.gmra.mxu0 %v1967
    %v1969 = vpop.f32.mrf.mxu0
    %v1970 = vadd.f32 %v1929, %v1969
    %1971 = vdwg.mxu0
    %v1972 = vand.u32 %v150, 4294901760
    %v1973 = vsub.f32 %v150, %v1972
    %v1974 = vand.u32 %v1973, 4294901760
    %v1975 = vsub.f32 %v1973, %v1974
    %v1976 = vand.u32 %v1975, 4294901760
    %1977 = vmatpush.msra.mxu0 %v1976
    %v1978 = vand.u32 %v149, 4294901760
    %v1979 = vsub.f32 %v149, %v1978
    %v1980 = vand.u32 %v1979, 4294901760
    %v1981 = vsub.f32 %v1979, %v1980
    %v1982 = vand.u32 %v1981, 4294901760
    %1983 = vmatpush.msra.mxu0 %v1982
    %v1984 = vand.u32 %v148, 4294901760
    %v1985 = vsub.f32 %v148, %v1984
    %v1986 = vand.u32 %v1985, 4294901760
    %v1987 = vsub.f32 %v1985, %v1986
    %v1988 = vand.u32 %v1987, 4294901760
    %1989 = vmatpush.msra.mxu0 %v1988
    %v1990 = vand.u32 %v147, 4294901760
    %v1991 = vsub.f32 %v147, %v1990
    %v1992 = vand.u32 %v1991, 4294901760
    %v1993 = vsub.f32 %v1991, %v1992
    %v1994 = vand.u32 %v1993, 4294901760
    %1995 = vmatpush.msra.mxu0 %v1994
    %v1996 = vand.u32 %v146, 4294901760
    %v1997 = vsub.f32 %v146, %v1996
    %v1998 = vand.u32 %v1997, 4294901760
    %v1999 = vsub.f32 %v1997, %v1998
    %v2000 = vand.u32 %v1999, 4294901760
    %2001 = vmatpush.msra.mxu0 %v2000
    %v2002 = vand.u32 %v145, 4294901760
    %v2003 = vsub.f32 %v145, %v2002
    %v2004 = vand.u32 %v2003, 4294901760
    %v2005 = vsub.f32 %v2003, %v2004
    %v2006 = vand.u32 %v2005, 4294901760
    %2007 = vmatpush.msra.mxu0 %v2006
    %v2008 = vand.u32 %v144, 4294901760
    %v2009 = vsub.f32 %v144, %v2008
    %v2010 = vand.u32 %v2009, 4294901760
    %v2011 = vsub.f32 %v2009, %v2010
    %v2012 = vand.u32 %v2011, 4294901760
    %2013 = vmatpush.msra.mxu0 %v2012
    %v2014 = vand.u32 %v143, 4294901760
    %v2015 = vsub.f32 %v143, %v2014
    %v2016 = vand.u32 %v2015, 4294901760
    %v2017 = vsub.f32 %v2015, %v2016
    %v2018 = vand.u32 %v2017, 4294901760
    %2019 = vmatpush.msra.mxu0 %v2018
    %v2020 = vand.u32 %v142, 4294901760
    %v2021 = vsub.f32 %v142, %v2020
    %v2022 = vand.u32 %v2021, 4294901760
    %v2023 = vsub.f32 %v2021, %v2022
    %v2024 = vand.u32 %v2023, 4294901760
    %2025 = vmatpush.msra.mxu0 %v2024
    %v2026 = vand.u32 %v141, 4294901760
    %v2027 = vsub.f32 %v141, %v2026
    %v2028 = vand.u32 %v2027, 4294901760
    %v2029 = vsub.f32 %v2027, %v2028
    %v2030 = vand.u32 %v2029, 4294901760
    %2031 = vmatpush.msra.mxu0 %v2030
    %v2032 = vand.u32 %v140, 4294901760
    %v2033 = vsub.f32 %v140, %v2032
    %v2034 = vand.u32 %v2033, 4294901760
    %v2035 = vsub.f32 %v2033, %v2034
    %v2036 = vand.u32 %v2035, 4294901760
    %2037 = vmatpush.msra.mxu0 %v2036
    %v2038 = vand.u32 %v139, 4294901760
    %v2039 = vsub.f32 %v139, %v2038
    %v2040 = vand.u32 %v2039, 4294901760
    %v2041 = vsub.f32 %v2039, %v2040
    %v2042 = vand.u32 %v2041, 4294901760
    %2043 = vmatpush.msra.mxu0 %v2042
    %v2044 = vand.u32 %v138, 4294901760
    %v2045 = vsub.f32 %v138, %v2044
    %v2046 = vand.u32 %v2045, 4294901760
    %v2047 = vsub.f32 %v2045, %v2046
    %v2048 = vand.u32 %v2047, 4294901760
    %2049 = vmatpush.msra.mxu0 %v2048
    %v2050 = vand.u32 %v137, 4294901760
    %v2051 = vsub.f32 %v137, %v2050
    %v2052 = vand.u32 %v2051, 4294901760
    %v2053 = vsub.f32 %v2051, %v2052
    %v2054 = vand.u32 %v2053, 4294901760
    %2055 = vmatpush.msra.mxu0 %v2054
    %v2056 = vand.u32 %v136, 4294901760
    %v2057 = vsub.f32 %v136, %v2056
    %v2058 = vand.u32 %v2057, 4294901760
    %v2059 = vsub.f32 %v2057, %v2058
    %v2060 = vand.u32 %v2059, 4294901760
    %2061 = vmatpush.msra.mxu0 %v2060
    %v2062 = vand.u32 %v135, 4294901760
    %v2063 = vsub.f32 %v135, %v2062
    %v2064 = vand.u32 %v2063, 4294901760
    %v2065 = vsub.f32 %v2063, %v2064
    %v2066 = vand.u32 %v2065, 4294901760
    %2067 = vmatpush.msra.mxu0 %v2066
    %v2068 = vand.u32 %v215, 4294901760
    %2069 = vmatmul.f32.gmra.mxu0 %v2068
    %v2070 = vpop.f32.mrf.mxu0
    %v2071 = vadd.f32 %v1970, %v2070
    %2072 = vdwg.mxu0
    %v2073 = vand.u32 %v150, 4294901760
    %v2074 = vsub.f32 %v150, %v2073
    %2075 = vmatpush.msra.mxu0 %v2074
    %v2076 = vand.u32 %v149, 4294901760
    %v2077 = vsub.f32 %v149, %v2076
    %2078 = vmatpush.msra.mxu0 %v2077
    %v2079 = vand.u32 %v148, 4294901760
    %v2080 = vsub.f32 %v148, %v2079
    %2081 = vmatpush.msra.mxu0 %v2080
    %v2082 = vand.u32 %v147, 4294901760
    %v2083 = vsub.f32 %v147, %v2082
    %2084 = vmatpush.msra.mxu0 %v2083
    %v2085 = vand.u32 %v146, 4294901760
    %v2086 = vsub.f32 %v146, %v2085
    %2087 = vmatpush.msra.mxu0 %v2086
    %v2088 = vand.u32 %v145, 4294901760
    %v2089 = vsub.f32 %v145, %v2088
    %2090 = vmatpush.msra.mxu0 %v2089
    %v2091 = vand.u32 %v144, 4294901760
    %v2092 = vsub.f32 %v144, %v2091
    %2093 = vmatpush.msra.mxu0 %v2092
    %v2094 = vand.u32 %v143, 4294901760
    %v2095 = vsub.f32 %v143, %v2094
    %2096 = vmatpush.msra.mxu0 %v2095
    %v2097 = vand.u32 %v142, 4294901760
    %v2098 = vsub.f32 %v142, %v2097
    %2099 = vmatpush.msra.mxu0 %v2098
    %v2100 = vand.u32 %v141, 4294901760
    %v2101 = vsub.f32 %v141, %v2100
    %2102 = vmatpush.msra.mxu0 %v2101
    %v2103 = vand.u32 %v140, 4294901760
    %v2104 = vsub.f32 %v140, %v2103
    %2105 = vmatpush.msra.mxu0 %v2104
    %v2106 = vand.u32 %v139, 4294901760
    %v2107 = vsub.f32 %v139, %v2106
    %2108 = vmatpush.msra.mxu0 %v2107
    %v2109 = vand.u32 %v138, 4294901760
    %v2110 = vsub.f32 %v138, %v2109
    %2111 = vmatpush.msra.mxu0 %v2110
    %v2112 = vand.u32 %v137, 4294901760
    %v2113 = vsub.f32 %v137, %v2112
    %2114 = vmatpush.msra.mxu0 %v2113
    %v2115 = vand.u32 %v136, 4294901760
    %v2116 = vsub.f32 %v136, %v2115
    %2117 = vmatpush.msra.mxu0 %v2116
    %v2118 = vand.u32 %v135, 4294901760
    %v2119 = vsub.f32 %v135, %v2118
    %2120 = vmatpush.msra.mxu0 %v2119
    %v2121 = vand.u32 %v215, 4294901760
    %v2122 = vsub.f32 %v215, %v2121
    %2123 = vmatmul.f32.gmra.mxu0 %v2122
    %v2124 = vpop.f32.mrf.mxu0
    %v2125 = vadd.f32 %v2071, %v2124
    %2126 = vdwg.mxu0
    %v2127 = vand.u32 %v150, 4294901760
    %2128 = vmatpush.msra.mxu0 %v2127
    %v2129 = vand.u32 %v149, 4294901760
    %2130 = vmatpush.msra.mxu0 %v2129
    %v2131 = vand.u32 %v148, 4294901760
    %2132 = vmatpush.msra.mxu0 %v2131
    %v2133 = vand.u32 %v147, 4294901760
    %2134 = vmatpush.msra.mxu0 %v2133
    %v2135 = vand.u32 %v146, 4294901760
    %2136 = vmatpush.msra.mxu0 %v2135
    %v2137 = vand.u32 %v145, 4294901760
    %2138 = vmatpush.msra.mxu0 %v2137
    %v2139 = vand.u32 %v144, 4294901760
    %2140 = vmatpush.msra.mxu0 %v2139
    %v2141 = vand.u32 %v143, 4294901760
    %2142 = vmatpush.msra.mxu0 %v2141
    %v2143 = vand.u32 %v142, 4294901760
    %2144 = vmatpush.msra.mxu0 %v2143
    %v2145 = vand.u32 %v141, 4294901760
    %2146 = vmatpush.msra.mxu0 %v2145
    %v2147 = vand.u32 %v140, 4294901760
    %2148 = vmatpush.msra.mxu0 %v2147
    %v2149 = vand.u32 %v139, 4294901760
    %2150 = vmatpush.msra.mxu0 %v2149
    %v2151 = vand.u32 %v138, 4294901760
    %2152 = vmatpush.msra.mxu0 %v2151
    %v2153 = vand.u32 %v137, 4294901760
    %2154 = vmatpush.msra.mxu0 %v2153
    %v2155 = vand.u32 %v136, 4294901760
    %2156 = vmatpush.msra.mxu0 %v2155
    %v2157 = vand.u32 %v135, 4294901760
    %2158 = vmatpush.msra.mxu0 %v2157
    %v2159 = vand.u32 %v215, 4294901760
    %v2160 = vsub.f32 %v215, %v2159
    %v2161 = vand.u32 %v2160, 4294901760
    %2162 = vmatmul.f32.gmra.mxu0 %v2161
    %v2163 = vpop.f32.mrf.mxu0
    %v2164 = vadd.f32 %v2125, %v2163
    %2165 = vdwg.mxu0
    %v2166 = vand.u32 %v150, 4294901760
    %v2167 = vsub.f32 %v150, %v2166
    %v2168 = vand.u32 %v2167, 4294901760
    %2169 = vmatpush.msra.mxu0 %v2168
    %v2170 = vand.u32 %v149, 4294901760
    %v2171 = vsub.f32 %v149, %v2170
    %v2172 = vand.u32 %v2171, 4294901760
    %2173 = vmatpush.msra.mxu0 %v2172
    %v2174 = vand.u32 %v148, 4294901760
    %v2175 = vsub.f32 %v148, %v2174
    %v2176 = vand.u32 %v2175, 4294901760
    %2177 = vmatpush.msra.mxu0 %v2176
    %v2178 = vand.u32 %v147, 4294901760
    %v2179 = vsub.f32 %v147, %v2178
    %v2180 = vand.u32 %v2179, 4294901760
    %2181 = vmatpush.msra.mxu0 %v2180
    %v2182 = vand.u32 %v146, 4294901760
    %v2183 = vsub.f32 %v146, %v2182
    %v2184 = vand.u32 %v2183, 4294901760
    %2185 = vmatpush.msra.mxu0 %v2184
    %v2186 = vand.u32 %v145, 4294901760
    %v2187 = vsub.f32 %v145, %v2186
    %v2188 = vand.u32 %v2187, 4294901760
    %2189 = vmatpush.msra.mxu0 %v2188
    %v2190 = vand.u32 %v144, 4294901760
    %v2191 = vsub.f32 %v144, %v2190
    %v2192 = vand.u32 %v2191, 4294901760
    %2193 = vmatpush.msra.mxu0 %v2192
    %v2194 = vand.u32 %v143, 4294901760
    %v2195 = vsub.f32 %v143, %v2194
    %v2196 = vand.u32 %v2195, 4294901760
    %2197 = vmatpush.msra.mxu0 %v2196
    %v2198 = vand.u32 %v142, 4294901760
    %v2199 = vsub.f32 %v142, %v2198
    %v2200 = vand.u32 %v2199, 4294901760
    %2201 = vmatpush.msra.mxu0 %v2200
    %v2202 = vand.u32 %v141, 4294901760
    %v2203 = vsub.f32 %v141, %v2202
    %v2204 = vand.u32 %v2203, 4294901760
    %2205 = vmatpush.msra.mxu0 %v2204
    %v2206 = vand.u32 %v140, 4294901760
    %v2207 = vsub.f32 %v140, %v2206
    %v2208 = vand.u32 %v2207, 4294901760
    %2209 = vmatpush.msra.mxu0 %v2208
    %v2210 = vand.u32 %v139, 4294901760
    %v2211 = vsub.f32 %v139, %v2210
    %v2212 = vand.u32 %v2211, 4294901760
    %2213 = vmatpush.msra.mxu0 %v2212
    %v2214 = vand.u32 %v138, 4294901760
    %v2215 = vsub.f32 %v138, %v2214
    %v2216 = vand.u32 %v2215, 4294901760
    %2217 = vmatpush.msra.mxu0 %v2216
    %v2218 = vand.u32 %v137, 4294901760
    %v2219 = vsub.f32 %v137, %v2218
    %v2220 = vand.u32 %v2219, 4294901760
    %2221 = vmatpush.msra.mxu0 %v2220
    %v2222 = vand.u32 %v136, 4294901760
    %v2223 = vsub.f32 %v136, %v2222
    %v2224 = vand.u32 %v2223, 4294901760
    %2225 = vmatpush.msra.mxu0 %v2224
    %v2226 = vand.u32 %v135, 4294901760
    %v2227 = vsub.f32 %v135, %v2226
    %v2228 = vand.u32 %v2227, 4294901760
    %2229 = vmatpush.msra.mxu0 %v2228
    %v2230 = vand.u32 %v215, 4294901760
    %2231 = vmatmul.f32.gmra.mxu0 %v2230
    %v2232 = vpop.f32.mrf.mxu0
    %v2233 = vadd.f32 %v2164, %v2232
    %2234 = vdwg.mxu0
    %v2235 = vand.u32 %v150, 4294901760
    %2236 = vmatpush.msra.mxu0 %v2235
    %v2237 = vand.u32 %v149, 4294901760
    %2238 = vmatpush.msra.mxu0 %v2237
    %v2239 = vand.u32 %v148, 4294901760
    %2240 = vmatpush.msra.mxu0 %v2239
    %v2241 = vand.u32 %v147, 4294901760
    %2242 = vmatpush.msra.mxu0 %v2241
    %v2243 = vand.u32 %v146, 4294901760
    %2244 = vmatpush.msra.mxu0 %v2243
    %v2245 = vand.u32 %v145, 4294901760
    %2246 = vmatpush.msra.mxu0 %v2245
    %v2247 = vand.u32 %v144, 4294901760
    %2248 = vmatpush.msra.mxu0 %v2247
    %v2249 = vand.u32 %v143, 4294901760
    %2250 = vmatpush.msra.mxu0 %v2249
    %v2251 = vand.u32 %v142, 4294901760
    %2252 = vmatpush.msra.mxu0 %v2251
    %v2253 = vand.u32 %v141, 4294901760
    %2254 = vmatpush.msra.mxu0 %v2253
    %v2255 = vand.u32 %v140, 4294901760
    %2256 = vmatpush.msra.mxu0 %v2255
    %v2257 = vand.u32 %v139, 4294901760
    %2258 = vmatpush.msra.mxu0 %v2257
    %v2259 = vand.u32 %v138, 4294901760
    %2260 = vmatpush.msra.mxu0 %v2259
    %v2261 = vand.u32 %v137, 4294901760
    %2262 = vmatpush.msra.mxu0 %v2261
    %v2263 = vand.u32 %v136, 4294901760
    %2264 = vmatpush.msra.mxu0 %v2263
    %v2265 = vand.u32 %v135, 4294901760
    %2266 = vmatpush.msra.mxu0 %v2265
    %v2267 = vand.u32 %v215, 4294901760
    %2268 = vmatmul.f32.gmra.mxu0 %v2267
    %v2269 = vpop.f32.mrf.mxu0
    %v2270 = vadd.f32 %v2233, %v2269
    %2271 = vdwg.mxu0
    %v2272 = vand.u32 %v166, 4294901760
    %2273 = vmatpush.msra.mxu0 %v2272
    %v2274 = vand.u32 %v165, 4294901760
    %2275 = vmatpush.msra.mxu0 %v2274
    %v2276 = vand.u32 %v164, 4294901760
    %2277 = vmatpush.msra.mxu0 %v2276
    %v2278 = vand.u32 %v163, 4294901760
    %2279 = vmatpush.msra.mxu0 %v2278
    %v2280 = vand.u32 %v162, 4294901760
    %2281 = vmatpush.msra.mxu0 %v2280
    %v2282 = vand.u32 %v161, 4294901760
    %2283 = vmatpush.msra.mxu0 %v2282
    %v2284 = vand.u32 %v160, 4294901760
    %2285 = vmatpush.msra.mxu0 %v2284
    %v2286 = vand.u32 %v159, 4294901760
    %2287 = vmatpush.msra.mxu0 %v2286
    %v2288 = vand.u32 %v158, 4294901760
    %2289 = vmatpush.msra.mxu0 %v2288
    %v2290 = vand.u32 %v157, 4294901760
    %2291 = vmatpush.msra.mxu0 %v2290
    %v2292 = vand.u32 %v156, 4294901760
    %2293 = vmatpush.msra.mxu0 %v2292
    %v2294 = vand.u32 %v155, 4294901760
    %2295 = vmatpush.msra.mxu0 %v2294
    %v2296 = vand.u32 %v154, 4294901760
    %2297 = vmatpush.msra.mxu0 %v2296
    %v2298 = vand.u32 %v153, 4294901760
    %2299 = vmatpush.msra.mxu0 %v2298
    %v2300 = vand.u32 %v152, 4294901760
    %2301 = vmatpush.msra.mxu0 %v2300
    %v2302 = vand.u32 %v151, 4294901760
    %2303 = vmatpush.msra.mxu0 %v2302
    %v2304 = vand.u32 %v216, 4294901760
    %v2305 = vsub.f32 %v216, %v2304
    %v2306 = vand.u32 %v2305, 4294901760
    %v2307 = vsub.f32 %v2305, %v2306
    %v2308 = vand.u32 %v2307, 4294901760
    %2309 = vmatmul.f32.gmra.mxu0 %v2308
    %v2310 = vpop.f32.mrf.mxu0
    %v2311 = vadd.f32 %v2270, %v2310
    %2312 = vdwg.mxu0
    %v2313 = vand.u32 %v166, 4294901760
    %v2314 = vsub.f32 %v166, %v2313
    %v2315 = vand.u32 %v2314, 4294901760
    %v2316 = vsub.f32 %v2314, %v2315
    %v2317 = vand.u32 %v2316, 4294901760
    %2318 = vmatpush.msra.mxu0 %v2317
    %v2319 = vand.u32 %v165, 4294901760
    %v2320 = vsub.f32 %v165, %v2319
    %v2321 = vand.u32 %v2320, 4294901760
    %v2322 = vsub.f32 %v2320, %v2321
    %v2323 = vand.u32 %v2322, 4294901760
    %2324 = vmatpush.msra.mxu0 %v2323
    %v2325 = vand.u32 %v164, 4294901760
    %v2326 = vsub.f32 %v164, %v2325
    %v2327 = vand.u32 %v2326, 4294901760
    %v2328 = vsub.f32 %v2326, %v2327
    %v2329 = vand.u32 %v2328, 4294901760
    %2330 = vmatpush.msra.mxu0 %v2329
    %v2331 = vand.u32 %v163, 4294901760
    %v2332 = vsub.f32 %v163, %v2331
    %v2333 = vand.u32 %v2332, 4294901760
    %v2334 = vsub.f32 %v2332, %v2333
    %v2335 = vand.u32 %v2334, 4294901760
    %2336 = vmatpush.msra.mxu0 %v2335
    %v2337 = vand.u32 %v162, 4294901760
    %v2338 = vsub.f32 %v162, %v2337
    %v2339 = vand.u32 %v2338, 4294901760
    %v2340 = vsub.f32 %v2338, %v2339
    %v2341 = vand.u32 %v2340, 4294901760
    %2342 = vmatpush.msra.mxu0 %v2341
    %v2343 = vand.u32 %v161, 4294901760
    %v2344 = vsub.f32 %v161, %v2343
    %v2345 = vand.u32 %v2344, 4294901760
    %v2346 = vsub.f32 %v2344, %v2345
    %v2347 = vand.u32 %v2346, 4294901760
    %2348 = vmatpush.msra.mxu0 %v2347
    %v2349 = vand.u32 %v160, 4294901760
    %v2350 = vsub.f32 %v160, %v2349
    %v2351 = vand.u32 %v2350, 4294901760
    %v2352 = vsub.f32 %v2350, %v2351
    %v2353 = vand.u32 %v2352, 4294901760
    %2354 = vmatpush.msra.mxu0 %v2353
    %v2355 = vand.u32 %v159, 4294901760
    %v2356 = vsub.f32 %v159, %v2355
    %v2357 = vand.u32 %v2356, 4294901760
    %v2358 = vsub.f32 %v2356, %v2357
    %v2359 = vand.u32 %v2358, 4294901760
    %2360 = vmatpush.msra.mxu0 %v2359
    %v2361 = vand.u32 %v158, 4294901760
    %v2362 = vsub.f32 %v158, %v2361
    %v2363 = vand.u32 %v2362, 4294901760
    %v2364 = vsub.f32 %v2362, %v2363
    %v2365 = vand.u32 %v2364, 4294901760
    %2366 = vmatpush.msra.mxu0 %v2365
    %v2367 = vand.u32 %v157, 4294901760
    %v2368 = vsub.f32 %v157, %v2367
    %v2369 = vand.u32 %v2368, 4294901760
    %v2370 = vsub.f32 %v2368, %v2369
    %v2371 = vand.u32 %v2370, 4294901760
    %2372 = vmatpush.msra.mxu0 %v2371
    %v2373 = vand.u32 %v156, 4294901760
    %v2374 = vsub.f32 %v156, %v2373
    %v2375 = vand.u32 %v2374, 4294901760
    %v2376 = vsub.f32 %v2374, %v2375
    %v2377 = vand.u32 %v2376, 4294901760
    %2378 = vmatpush.msra.mxu0 %v2377
    %v2379 = vand.u32 %v155, 4294901760
    %v2380 = vsub.f32 %v155, %v2379
    %v2381 = vand.u32 %v2380, 4294901760
    %v2382 = vsub.f32 %v2380, %v2381
    %v2383 = vand.u32 %v2382, 4294901760
    %2384 = vmatpush.msra.mxu0 %v2383
    %v2385 = vand.u32 %v154, 4294901760
    %v2386 = vsub.f32 %v154, %v2385
    %v2387 = vand.u32 %v2386, 4294901760
    %v2388 = vsub.f32 %v2386, %v2387
    %v2389 = vand.u32 %v2388, 4294901760
    %2390 = vmatpush.msra.mxu0 %v2389
    %v2391 = vand.u32 %v153, 4294901760
    %v2392 = vsub.f32 %v153, %v2391
    %v2393 = vand.u32 %v2392, 4294901760
    %v2394 = vsub.f32 %v2392, %v2393
    %v2395 = vand.u32 %v2394, 4294901760
    %2396 = vmatpush.msra.mxu0 %v2395
    %v2397 = vand.u32 %v152, 4294901760
    %v2398 = vsub.f32 %v152, %v2397
    %v2399 = vand.u32 %v2398, 4294901760
    %v2400 = vsub.f32 %v2398, %v2399
    %v2401 = vand.u32 %v2400, 4294901760
    %2402 = vmatpush.msra.mxu0 %v2401
    %v2403 = vand.u32 %v151, 4294901760
    %v2404 = vsub.f32 %v151, %v2403
    %v2405 = vand.u32 %v2404, 4294901760
    %v2406 = vsub.f32 %v2404, %v2405
    %v2407 = vand.u32 %v2406, 4294901760
    %2408 = vmatpush.msra.mxu0 %v2407
    %v2409 = vand.u32 %v216, 4294901760
    %2410 = vmatmul.f32.gmra.mxu0 %v2409
    %v2411 = vpop.f32.mrf.mxu0
    %v2412 = vadd.f32 %v2311, %v2411
    %2413 = vdwg.mxu0
    %v2414 = vand.u32 %v166, 4294901760
    %v2415 = vsub.f32 %v166, %v2414
    %2416 = vmatpush.msra.mxu0 %v2415
    %v2417 = vand.u32 %v165, 4294901760
    %v2418 = vsub.f32 %v165, %v2417
    %2419 = vmatpush.msra.mxu0 %v2418
    %v2420 = vand.u32 %v164, 4294901760
    %v2421 = vsub.f32 %v164, %v2420
    %2422 = vmatpush.msra.mxu0 %v2421
    %v2423 = vand.u32 %v163, 4294901760
    %v2424 = vsub.f32 %v163, %v2423
    %2425 = vmatpush.msra.mxu0 %v2424
    %v2426 = vand.u32 %v162, 4294901760
    %v2427 = vsub.f32 %v162, %v2426
    %2428 = vmatpush.msra.mxu0 %v2427
    %v2429 = vand.u32 %v161, 4294901760
    %v2430 = vsub.f32 %v161, %v2429
    %2431 = vmatpush.msra.mxu0 %v2430
    %v2432 = vand.u32 %v160, 4294901760
    %v2433 = vsub.f32 %v160, %v2432
    %2434 = vmatpush.msra.mxu0 %v2433
    %v2435 = vand.u32 %v159, 4294901760
    %v2436 = vsub.f32 %v159, %v2435
    %2437 = vmatpush.msra.mxu0 %v2436
    %v2438 = vand.u32 %v158, 4294901760
    %v2439 = vsub.f32 %v158, %v2438
    %2440 = vmatpush.msra.mxu0 %v2439
    %v2441 = vand.u32 %v157, 4294901760
    %v2442 = vsub.f32 %v157, %v2441
    %2443 = vmatpush.msra.mxu0 %v2442
    %v2444 = vand.u32 %v156, 4294901760
    %v2445 = vsub.f32 %v156, %v2444
    %2446 = vmatpush.msra.mxu0 %v2445
    %v2447 = vand.u32 %v155, 4294901760
    %v2448 = vsub.f32 %v155, %v2447
    %2449 = vmatpush.msra.mxu0 %v2448
    %v2450 = vand.u32 %v154, 4294901760
    %v2451 = vsub.f32 %v154, %v2450
    %2452 = vmatpush.msra.mxu0 %v2451
    %v2453 = vand.u32 %v153, 4294901760
    %v2454 = vsub.f32 %v153, %v2453
    %2455 = vmatpush.msra.mxu0 %v2454
    %v2456 = vand.u32 %v152, 4294901760
    %v2457 = vsub.f32 %v152, %v2456
    %2458 = vmatpush.msra.mxu0 %v2457
    %v2459 = vand.u32 %v151, 4294901760
    %v2460 = vsub.f32 %v151, %v2459
    %2461 = vmatpush.msra.mxu0 %v2460
    %v2462 = vand.u32 %v216, 4294901760
    %v2463 = vsub.f32 %v216, %v2462
    %2464 = vmatmul.f32.gmra.mxu0 %v2463
    %v2465 = vpop.f32.mrf.mxu0
    %v2466 = vadd.f32 %v2412, %v2465
    %2467 = vdwg.mxu0
    %v2468 = vand.u32 %v166, 4294901760
    %2469 = vmatpush.msra.mxu0 %v2468
    %v2470 = vand.u32 %v165, 4294901760
    %2471 = vmatpush.msra.mxu0 %v2470
    %v2472 = vand.u32 %v164, 4294901760
    %2473 = vmatpush.msra.mxu0 %v2472
    %v2474 = vand.u32 %v163, 4294901760
    %2475 = vmatpush.msra.mxu0 %v2474
    %v2476 = vand.u32 %v162, 4294901760
    %2477 = vmatpush.msra.mxu0 %v2476
    %v2478 = vand.u32 %v161, 4294901760
    %2479 = vmatpush.msra.mxu0 %v2478
    %v2480 = vand.u32 %v160, 4294901760
    %2481 = vmatpush.msra.mxu0 %v2480
    %v2482 = vand.u32 %v159, 4294901760
    %2483 = vmatpush.msra.mxu0 %v2482
    %v2484 = vand.u32 %v158, 4294901760
    %2485 = vmatpush.msra.mxu0 %v2484
    %v2486 = vand.u32 %v157, 4294901760
    %2487 = vmatpush.msra.mxu0 %v2486
    %v2488 = vand.u32 %v156, 4294901760
    %2489 = vmatpush.msra.mxu0 %v2488
    %v2490 = vand.u32 %v155, 4294901760
    %2491 = vmatpush.msra.mxu0 %v2490
    %v2492 = vand.u32 %v154, 4294901760
    %2493 = vmatpush.msra.mxu0 %v2492
    %v2494 = vand.u32 %v153, 4294901760
    %2495 = vmatpush.msra.mxu0 %v2494
    %v2496 = vand.u32 %v152, 4294901760
    %2497 = vmatpush.msra.mxu0 %v2496
    %v2498 = vand.u32 %v151, 4294901760
    %2499 = vmatpush.msra.mxu0 %v2498
    %v2500 = vand.u32 %v216, 4294901760
    %v2501 = vsub.f32 %v216, %v2500
    %v2502 = vand.u32 %v2501, 4294901760
    %2503 = vmatmul.f32.gmra.mxu0 %v2502
    %v2504 = vpop.f32.mrf.mxu0
    %v2505 = vadd.f32 %v2466, %v2504
    %2506 = vdwg.mxu0
    %v2507 = vand.u32 %v166, 4294901760
    %v2508 = vsub.f32 %v166, %v2507
    %v2509 = vand.u32 %v2508, 4294901760
    %2510 = vmatpush.msra.mxu0 %v2509
    %v2511 = vand.u32 %v165, 4294901760
    %v2512 = vsub.f32 %v165, %v2511
    %v2513 = vand.u32 %v2512, 4294901760
    %2514 = vmatpush.msra.mxu0 %v2513
    %v2515 = vand.u32 %v164, 4294901760
    %v2516 = vsub.f32 %v164, %v2515
    %v2517 = vand.u32 %v2516, 4294901760
    %2518 = vmatpush.msra.mxu0 %v2517
    %v2519 = vand.u32 %v163, 4294901760
    %v2520 = vsub.f32 %v163, %v2519
    %v2521 = vand.u32 %v2520, 4294901760
    %2522 = vmatpush.msra.mxu0 %v2521
    %v2523 = vand.u32 %v162, 4294901760
    %v2524 = vsub.f32 %v162, %v2523
    %v2525 = vand.u32 %v2524, 4294901760
    %2526 = vmatpush.msra.mxu0 %v2525
    %v2527 = vand.u32 %v161, 4294901760
    %v2528 = vsub.f32 %v161, %v2527
    %v2529 = vand.u32 %v2528, 4294901760
    %2530 = vmatpush.msra.mxu0 %v2529
    %v2531 = vand.u32 %v160, 4294901760
    %v2532 = vsub.f32 %v160, %v2531
    %v2533 = vand.u32 %v2532, 4294901760
    %2534 = vmatpush.msra.mxu0 %v2533
    %v2535 = vand.u32 %v159, 4294901760
    %v2536 = vsub.f32 %v159, %v2535
    %v2537 = vand.u32 %v2536, 4294901760
    %2538 = vmatpush.msra.mxu0 %v2537
    %v2539 = vand.u32 %v158, 4294901760
    %v2540 = vsub.f32 %v158, %v2539
    %v2541 = vand.u32 %v2540, 4294901760
    %2542 = vmatpush.msra.mxu0 %v2541
    %v2543 = vand.u32 %v157, 4294901760
    %v2544 = vsub.f32 %v157, %v2543
    %v2545 = vand.u32 %v2544, 4294901760
    %2546 = vmatpush.msra.mxu0 %v2545
    %v2547 = vand.u32 %v156, 4294901760
    %v2548 = vsub.f32 %v156, %v2547
    %v2549 = vand.u32 %v2548, 4294901760
    %2550 = vmatpush.msra.mxu0 %v2549
    %v2551 = vand.u32 %v155, 4294901760
    %v2552 = vsub.f32 %v155, %v2551
    %v2553 = vand.u32 %v2552, 4294901760
    %2554 = vmatpush.msra.mxu0 %v2553
    %v2555 = vand.u32 %v154, 4294901760
    %v2556 = vsub.f32 %v154, %v2555
    %v2557 = vand.u32 %v2556, 4294901760
    %2558 = vmatpush.msra.mxu0 %v2557
    %v2559 = vand.u32 %v153, 4294901760
    %v2560 = vsub.f32 %v153, %v2559
    %v2561 = vand.u32 %v2560, 4294901760
    %2562 = vmatpush.msra.mxu0 %v2561
    %v2563 = vand.u32 %v152, 4294901760
    %v2564 = vsub.f32 %v152, %v2563
    %v2565 = vand.u32 %v2564, 4294901760
    %2566 = vmatpush.msra.mxu0 %v2565
    %v2567 = vand.u32 %v151, 4294901760
    %v2568 = vsub.f32 %v151, %v2567
    %v2569 = vand.u32 %v2568, 4294901760
    %2570 = vmatpush.msra.mxu0 %v2569
    %v2571 = vand.u32 %v216, 4294901760
    %2572 = vmatmul.f32.gmra.mxu0 %v2571
    %v2573 = vpop.f32.mrf.mxu0
    %v2574 = vadd.f32 %v2505, %v2573
    %2575 = vdwg.mxu0
    %v2576 = vand.u32 %v166, 4294901760
    %2577 = vmatpush.msra.mxu0 %v2576
    %v2578 = vand.u32 %v165, 4294901760
    %2579 = vmatpush.msra.mxu0 %v2578
    %v2580 = vand.u32 %v164, 4294901760
    %2581 = vmatpush.msra.mxu0 %v2580
    %v2582 = vand.u32 %v163, 4294901760
    %2583 = vmatpush.msra.mxu0 %v2582
    %v2584 = vand.u32 %v162, 4294901760
    %2585 = vmatpush.msra.mxu0 %v2584
    %v2586 = vand.u32 %v161, 4294901760
    %2587 = vmatpush.msra.mxu0 %v2586
    %v2588 = vand.u32 %v160, 4294901760
    %2589 = vmatpush.msra.mxu0 %v2588
    %v2590 = vand.u32 %v159, 4294901760
    %2591 = vmatpush.msra.mxu0 %v2590
    %v2592 = vand.u32 %v158, 4294901760
    %2593 = vmatpush.msra.mxu0 %v2592
    %v2594 = vand.u32 %v157, 4294901760
    %2595 = vmatpush.msra.mxu0 %v2594
    %v2596 = vand.u32 %v156, 4294901760
    %2597 = vmatpush.msra.mxu0 %v2596
    %v2598 = vand.u32 %v155, 4294901760
    %2599 = vmatpush.msra.mxu0 %v2598
    %v2600 = vand.u32 %v154, 4294901760
    %2601 = vmatpush.msra.mxu0 %v2600
    %v2602 = vand.u32 %v153, 4294901760
    %2603 = vmatpush.msra.mxu0 %v2602
    %v2604 = vand.u32 %v152, 4294901760
    %2605 = vmatpush.msra.mxu0 %v2604
    %v2606 = vand.u32 %v151, 4294901760
    %2607 = vmatpush.msra.mxu0 %v2606
    %v2608 = vand.u32 %v216, 4294901760
    %2609 = vmatmul.f32.gmra.mxu0 %v2608
    %v2610 = vpop.f32.mrf.mxu0
    %v2611 = vadd.f32 %v2574, %v2610
    %2612 = vdwg.mxu0
    %v2613 = vand.u32 %v182, 4294901760
    %2614 = vmatpush.msra.mxu0 %v2613
    %v2615 = vand.u32 %v181, 4294901760
    %2616 = vmatpush.msra.mxu0 %v2615
    %v2617 = vand.u32 %v180, 4294901760
    %2618 = vmatpush.msra.mxu0 %v2617
    %v2619 = vand.u32 %v179, 4294901760
    %2620 = vmatpush.msra.mxu0 %v2619
    %v2621 = vand.u32 %v178, 4294901760
    %2622 = vmatpush.msra.mxu0 %v2621
    %v2623 = vand.u32 %v177, 4294901760
    %2624 = vmatpush.msra.mxu0 %v2623
    %v2625 = vand.u32 %v176, 4294901760
    %2626 = vmatpush.msra.mxu0 %v2625
    %v2627 = vand.u32 %v175, 4294901760
    %2628 = vmatpush.msra.mxu0 %v2627
    %v2629 = vand.u32 %v174, 4294901760
    %2630 = vmatpush.msra.mxu0 %v2629
    %v2631 = vand.u32 %v173, 4294901760
    %2632 = vmatpush.msra.mxu0 %v2631
    %v2633 = vand.u32 %v172, 4294901760
    %2634 = vmatpush.msra.mxu0 %v2633
    %v2635 = vand.u32 %v171, 4294901760
    %2636 = vmatpush.msra.mxu0 %v2635
    %v2637 = vand.u32 %v170, 4294901760
    %2638 = vmatpush.msra.mxu0 %v2637
    %v2639 = vand.u32 %v169, 4294901760
    %2640 = vmatpush.msra.mxu0 %v2639
    %v2641 = vand.u32 %v168, 4294901760
    %2642 = vmatpush.msra.mxu0 %v2641
    %v2643 = vand.u32 %v167, 4294901760
    %2644 = vmatpush.msra.mxu0 %v2643
    %v2645 = vand.u32 %v217, 4294901760
    %v2646 = vsub.f32 %v217, %v2645
    %v2647 = vand.u32 %v2646, 4294901760
    %v2648 = vsub.f32 %v2646, %v2647
    %v2649 = vand.u32 %v2648, 4294901760
    %2650 = vmatmul.f32.gmra.mxu0 %v2649
    %v2651 = vpop.f32.mrf.mxu0
    %v2652 = vadd.f32 %v2611, %v2651
    %2653 = vdwg.mxu0
    %v2654 = vand.u32 %v182, 4294901760
    %v2655 = vsub.f32 %v182, %v2654
    %v2656 = vand.u32 %v2655, 4294901760
    %v2657 = vsub.f32 %v2655, %v2656
    %v2658 = vand.u32 %v2657, 4294901760
    %2659 = vmatpush.msra.mxu0 %v2658
    %v2660 = vand.u32 %v181, 4294901760
    %v2661 = vsub.f32 %v181, %v2660
    %v2662 = vand.u32 %v2661, 4294901760
    %v2663 = vsub.f32 %v2661, %v2662
    %v2664 = vand.u32 %v2663, 4294901760
    %2665 = vmatpush.msra.mxu0 %v2664
    %v2666 = vand.u32 %v180, 4294901760
    %v2667 = vsub.f32 %v180, %v2666
    %v2668 = vand.u32 %v2667, 4294901760
    %v2669 = vsub.f32 %v2667, %v2668
    %v2670 = vand.u32 %v2669, 4294901760
    %2671 = vmatpush.msra.mxu0 %v2670
    %v2672 = vand.u32 %v179, 4294901760
    %v2673 = vsub.f32 %v179, %v2672
    %v2674 = vand.u32 %v2673, 4294901760
    %v2675 = vsub.f32 %v2673, %v2674
    %v2676 = vand.u32 %v2675, 4294901760
    %2677 = vmatpush.msra.mxu0 %v2676
    %v2678 = vand.u32 %v178, 4294901760
    %v2679 = vsub.f32 %v178, %v2678
    %v2680 = vand.u32 %v2679, 4294901760
    %v2681 = vsub.f32 %v2679, %v2680
    %v2682 = vand.u32 %v2681, 4294901760
    %2683 = vmatpush.msra.mxu0 %v2682
    %v2684 = vand.u32 %v177, 4294901760
    %v2685 = vsub.f32 %v177, %v2684
    %v2686 = vand.u32 %v2685, 4294901760
    %v2687 = vsub.f32 %v2685, %v2686
    %v2688 = vand.u32 %v2687, 4294901760
    %2689 = vmatpush.msra.mxu0 %v2688
    %v2690 = vand.u32 %v176, 4294901760
    %v2691 = vsub.f32 %v176, %v2690
    %v2692 = vand.u32 %v2691, 4294901760
    %v2693 = vsub.f32 %v2691, %v2692
    %v2694 = vand.u32 %v2693, 4294901760
    %2695 = vmatpush.msra.mxu0 %v2694
    %v2696 = vand.u32 %v175, 4294901760
    %v2697 = vsub.f32 %v175, %v2696
    %v2698 = vand.u32 %v2697, 4294901760
    %v2699 = vsub.f32 %v2697, %v2698
    %v2700 = vand.u32 %v2699, 4294901760
    %2701 = vmatpush.msra.mxu0 %v2700
    %v2702 = vand.u32 %v174, 4294901760
    %v2703 = vsub.f32 %v174, %v2702
    %v2704 = vand.u32 %v2703, 4294901760
    %v2705 = vsub.f32 %v2703, %v2704
    %v2706 = vand.u32 %v2705, 4294901760
    %2707 = vmatpush.msra.mxu0 %v2706
    %v2708 = vand.u32 %v173, 4294901760
    %v2709 = vsub.f32 %v173, %v2708
    %v2710 = vand.u32 %v2709, 4294901760
    %v2711 = vsub.f32 %v2709, %v2710
    %v2712 = vand.u32 %v2711, 4294901760
    %2713 = vmatpush.msra.mxu0 %v2712
    %v2714 = vand.u32 %v172, 4294901760
    %v2715 = vsub.f32 %v172, %v2714
    %v2716 = vand.u32 %v2715, 4294901760
    %v2717 = vsub.f32 %v2715, %v2716
    %v2718 = vand.u32 %v2717, 4294901760
    %2719 = vmatpush.msra.mxu0 %v2718
    %v2720 = vand.u32 %v171, 4294901760
    %v2721 = vsub.f32 %v171, %v2720
    %v2722 = vand.u32 %v2721, 4294901760
    %v2723 = vsub.f32 %v2721, %v2722
    %v2724 = vand.u32 %v2723, 4294901760
    %2725 = vmatpush.msra.mxu0 %v2724
    %v2726 = vand.u32 %v170, 4294901760
    %v2727 = vsub.f32 %v170, %v2726
    %v2728 = vand.u32 %v2727, 4294901760
    %v2729 = vsub.f32 %v2727, %v2728
    %v2730 = vand.u32 %v2729, 4294901760
    %2731 = vmatpush.msra.mxu0 %v2730
    %v2732 = vand.u32 %v169, 4294901760
    %v2733 = vsub.f32 %v169, %v2732
    %v2734 = vand.u32 %v2733, 4294901760
    %v2735 = vsub.f32 %v2733, %v2734
    %v2736 = vand.u32 %v2735, 4294901760
    %2737 = vmatpush.msra.mxu0 %v2736
    %v2738 = vand.u32 %v168, 4294901760
    %v2739 = vsub.f32 %v168, %v2738
    %v2740 = vand.u32 %v2739, 4294901760
    %v2741 = vsub.f32 %v2739, %v2740
    %v2742 = vand.u32 %v2741, 4294901760
    %2743 = vmatpush.msra.mxu0 %v2742
    %v2744 = vand.u32 %v167, 4294901760
    %v2745 = vsub.f32 %v167, %v2744
    %v2746 = vand.u32 %v2745, 4294901760
    %v2747 = vsub.f32 %v2745, %v2746
    %v2748 = vand.u32 %v2747, 4294901760
    %2749 = vmatpush.msra.mxu0 %v2748
    %v2750 = vand.u32 %v217, 4294901760
    %2751 = vmatmul.f32.gmra.mxu0 %v2750
    %v2752 = vpop.f32.mrf.mxu0
    %v2753 = vadd.f32 %v2652, %v2752
    %2754 = vdwg.mxu0
    %v2755 = vand.u32 %v182, 4294901760
    %v2756 = vsub.f32 %v182, %v2755
    %2757 = vmatpush.msra.mxu0 %v2756
    %v2758 = vand.u32 %v181, 4294901760
    %v2759 = vsub.f32 %v181, %v2758
    %2760 = vmatpush.msra.mxu0 %v2759
    %v2761 = vand.u32 %v180, 4294901760
    %v2762 = vsub.f32 %v180, %v2761
    %2763 = vmatpush.msra.mxu0 %v2762
    %v2764 = vand.u32 %v179, 4294901760
    %v2765 = vsub.f32 %v179, %v2764
    %2766 = vmatpush.msra.mxu0 %v2765
    %v2767 = vand.u32 %v178, 4294901760
    %v2768 = vsub.f32 %v178, %v2767
    %2769 = vmatpush.msra.mxu0 %v2768
    %v2770 = vand.u32 %v177, 4294901760
    %v2771 = vsub.f32 %v177, %v2770
    %2772 = vmatpush.msra.mxu0 %v2771
    %v2773 = vand.u32 %v176, 4294901760
    %v2774 = vsub.f32 %v176, %v2773
    %2775 = vmatpush.msra.mxu0 %v2774
    %v2776 = vand.u32 %v175, 4294901760
    %v2777 = vsub.f32 %v175, %v2776
    %2778 = vmatpush.msra.mxu0 %v2777
    %v2779 = vand.u32 %v174, 4294901760
    %v2780 = vsub.f32 %v174, %v2779
    %2781 = vmatpush.msra.mxu0 %v2780
    %v2782 = vand.u32 %v173, 4294901760
    %v2783 = vsub.f32 %v173, %v2782
    %2784 = vmatpush.msra.mxu0 %v2783
    %v2785 = vand.u32 %v172, 4294901760
    %v2786 = vsub.f32 %v172, %v2785
    %2787 = vmatpush.msra.mxu0 %v2786
    %v2788 = vand.u32 %v171, 4294901760
    %v2789 = vsub.f32 %v171, %v2788
    %2790 = vmatpush.msra.mxu0 %v2789
    %v2791 = vand.u32 %v170, 4294901760
    %v2792 = vsub.f32 %v170, %v2791
    %2793 = vmatpush.msra.mxu0 %v2792
    %v2794 = vand.u32 %v169, 4294901760
    %v2795 = vsub.f32 %v169, %v2794
    %2796 = vmatpush.msra.mxu0 %v2795
    %v2797 = vand.u32 %v168, 4294901760
    %v2798 = vsub.f32 %v168, %v2797
    %2799 = vmatpush.msra.mxu0 %v2798
    %v2800 = vand.u32 %v167, 4294901760
    %v2801 = vsub.f32 %v167, %v2800
    %2802 = vmatpush.msra.mxu0 %v2801
    %v2803 = vand.u32 %v217, 4294901760
    %v2804 = vsub.f32 %v217, %v2803
    %2805 = vmatmul.f32.gmra.mxu0 %v2804
    %v2806 = vpop.f32.mrf.mxu0
    %v2807 = vadd.f32 %v2753, %v2806
    %2808 = vdwg.mxu0
    %v2809 = vand.u32 %v182, 4294901760
    %2810 = vmatpush.msra.mxu0 %v2809
    %v2811 = vand.u32 %v181, 4294901760
    %2812 = vmatpush.msra.mxu0 %v2811
    %v2813 = vand.u32 %v180, 4294901760
    %2814 = vmatpush.msra.mxu0 %v2813
    %v2815 = vand.u32 %v179, 4294901760
    %2816 = vmatpush.msra.mxu0 %v2815
    %v2817 = vand.u32 %v178, 4294901760
    %2818 = vmatpush.msra.mxu0 %v2817
    %v2819 = vand.u32 %v177, 4294901760
    %2820 = vmatpush.msra.mxu0 %v2819
    %v2821 = vand.u32 %v176, 4294901760
    %2822 = vmatpush.msra.mxu0 %v2821
    %v2823 = vand.u32 %v175, 4294901760
    %2824 = vmatpush.msra.mxu0 %v2823
    %v2825 = vand.u32 %v174, 4294901760
    %2826 = vmatpush.msra.mxu0 %v2825
    %v2827 = vand.u32 %v173, 4294901760
    %2828 = vmatpush.msra.mxu0 %v2827
    %v2829 = vand.u32 %v172, 4294901760
    %2830 = vmatpush.msra.mxu0 %v2829
    %v2831 = vand.u32 %v171, 4294901760
    %2832 = vmatpush.msra.mxu0 %v2831
    %v2833 = vand.u32 %v170, 4294901760
    %2834 = vmatpush.msra.mxu0 %v2833
    %v2835 = vand.u32 %v169, 4294901760
    %2836 = vmatpush.msra.mxu0 %v2835
    %v2837 = vand.u32 %v168, 4294901760
    %2838 = vmatpush.msra.mxu0 %v2837
    %v2839 = vand.u32 %v167, 4294901760
    %2840 = vmatpush.msra.mxu0 %v2839
    %v2841 = vand.u32 %v217, 4294901760
    %v2842 = vsub.f32 %v217, %v2841
    %v2843 = vand.u32 %v2842, 4294901760
    %2844 = vmatmul.f32.gmra.mxu0 %v2843
    %v2845 = vpop.f32.mrf.mxu0
    %v2846 = vadd.f32 %v2807, %v2845
    %2847 = vdwg.mxu0
    %v2848 = vand.u32 %v182, 4294901760
    %v2849 = vsub.f32 %v182, %v2848
    %v2850 = vand.u32 %v2849, 4294901760
    %2851 = vmatpush.msra.mxu0 %v2850
    %v2852 = vand.u32 %v181, 4294901760
    %v2853 = vsub.f32 %v181, %v2852
    %v2854 = vand.u32 %v2853, 4294901760
    %2855 = vmatpush.msra.mxu0 %v2854
    %v2856 = vand.u32 %v180, 4294901760
    %v2857 = vsub.f32 %v180, %v2856
    %v2858 = vand.u32 %v2857, 4294901760
    %2859 = vmatpush.msra.mxu0 %v2858
    %v2860 = vand.u32 %v179, 4294901760
    %v2861 = vsub.f32 %v179, %v2860
    %v2862 = vand.u32 %v2861, 4294901760
    %2863 = vmatpush.msra.mxu0 %v2862
    %v2864 = vand.u32 %v178, 4294901760
    %v2865 = vsub.f32 %v178, %v2864
    %v2866 = vand.u32 %v2865, 4294901760
    %2867 = vmatpush.msra.mxu0 %v2866
    %v2868 = vand.u32 %v177, 4294901760
    %v2869 = vsub.f32 %v177, %v2868
    %v2870 = vand.u32 %v2869, 4294901760
    %2871 = vmatpush.msra.mxu0 %v2870
    %v2872 = vand.u32 %v176, 4294901760
    %v2873 = vsub.f32 %v176, %v2872
    %v2874 = vand.u32 %v2873, 4294901760
    %2875 = vmatpush.msra.mxu0 %v2874
    %v2876 = vand.u32 %v175, 4294901760
    %v2877 = vsub.f32 %v175, %v2876
    %v2878 = vand.u32 %v2877, 4294901760
    %2879 = vmatpush.msra.mxu0 %v2878
    %v2880 = vand.u32 %v174, 4294901760
    %v2881 = vsub.f32 %v174, %v2880
    %v2882 = vand.u32 %v2881, 4294901760
    %2883 = vmatpush.msra.mxu0 %v2882
    %v2884 = vand.u32 %v173, 4294901760
    %v2885 = vsub.f32 %v173, %v2884
    %v2886 = vand.u32 %v2885, 4294901760
    %2887 = vmatpush.msra.mxu0 %v2886
    %v2888 = vand.u32 %v172, 4294901760
    %v2889 = vsub.f32 %v172, %v2888
    %v2890 = vand.u32 %v2889, 4294901760
    %2891 = vmatpush.msra.mxu0 %v2890
    %v2892 = vand.u32 %v171, 4294901760
    %v2893 = vsub.f32 %v171, %v2892
    %v2894 = vand.u32 %v2893, 4294901760
    %2895 = vmatpush.msra.mxu0 %v2894
    %v2896 = vand.u32 %v170, 4294901760
    %v2897 = vsub.f32 %v170, %v2896
    %v2898 = vand.u32 %v2897, 4294901760
    %2899 = vmatpush.msra.mxu0 %v2898
    %v2900 = vand.u32 %v169, 4294901760
    %v2901 = vsub.f32 %v169, %v2900
    %v2902 = vand.u32 %v2901, 4294901760
    %2903 = vmatpush.msra.mxu0 %v2902
    %v2904 = vand.u32 %v168, 4294901760
    %v2905 = vsub.f32 %v168, %v2904
    %v2906 = vand.u32 %v2905, 4294901760
    %2907 = vmatpush.msra.mxu0 %v2906
    %v2908 = vand.u32 %v167, 4294901760
    %v2909 = vsub.f32 %v167, %v2908
    %v2910 = vand.u32 %v2909, 4294901760
    %2911 = vmatpush.msra.mxu0 %v2910
    %v2912 = vand.u32 %v217, 4294901760
    %2913 = vmatmul.f32.gmra.mxu0 %v2912
    %v2914 = vpop.f32.mrf.mxu0
    %v2915 = vadd.f32 %v2846, %v2914
    %2916 = vdwg.mxu0
    %v2917 = vand.u32 %v182, 4294901760
    %2918 = vmatpush.msra.mxu0 %v2917
    %v2919 = vand.u32 %v181, 4294901760
    %2920 = vmatpush.msra.mxu0 %v2919
    %v2921 = vand.u32 %v180, 4294901760
    %2922 = vmatpush.msra.mxu0 %v2921
    %v2923 = vand.u32 %v179, 4294901760
    %2924 = vmatpush.msra.mxu0 %v2923
    %v2925 = vand.u32 %v178, 4294901760
    %2926 = vmatpush.msra.mxu0 %v2925
    %v2927 = vand.u32 %v177, 4294901760
    %2928 = vmatpush.msra.mxu0 %v2927
    %v2929 = vand.u32 %v176, 4294901760
    %2930 = vmatpush.msra.mxu0 %v2929
    %v2931 = vand.u32 %v175, 4294901760
    %2932 = vmatpush.msra.mxu0 %v2931
    %v2933 = vand.u32 %v174, 4294901760
    %2934 = vmatpush.msra.mxu0 %v2933
    %v2935 = vand.u32 %v173, 4294901760
    %2936 = vmatpush.msra.mxu0 %v2935
    %v2937 = vand.u32 %v172, 4294901760
    %2938 = vmatpush.msra.mxu0 %v2937
    %v2939 = vand.u32 %v171, 4294901760
    %2940 = vmatpush.msra.mxu0 %v2939
    %v2941 = vand.u32 %v170, 4294901760
    %2942 = vmatpush.msra.mxu0 %v2941
    %v2943 = vand.u32 %v169, 4294901760
    %2944 = vmatpush.msra.mxu0 %v2943
    %v2945 = vand.u32 %v168, 4294901760
    %2946 = vmatpush.msra.mxu0 %v2945
    %v2947 = vand.u32 %v167, 4294901760
    %2948 = vmatpush.msra.mxu0 %v2947
    %v2949 = vand.u32 %v217, 4294901760
    %2950 = vmatmul.f32.gmra.mxu0 %v2949
    %v2951 = vpop.f32.mrf.mxu0
    %v2952 = vadd.f32 %v2915, %v2951
    %2953 = vdwg.mxu0
    %2954 = vst [vmem:[#allocation7] sm:$0xff] %v2952
    // Predicated region
    $region22: #{tpu_custom_call.1} parent=1 // pred_check
      _
    $region23: #{tpu_custom_call.1} parent=1 // pred_check_branch
      %2956 = sbr.rel (0) target = $region25
    $region24: #{tpu_custom_call.1} parent=1 // pred_region
      %2958 = vsyncadd [#allocation4], 96
      %s2959 = sshll.u32 [#allocation7], 4
      %s2960 = int_to_ptr.vmem [resolvable:$true] %s2959
      %s2961 = sshll.u32 %s3, 4
      %s2962 = int_to_ptr.hbm [resolvable:$true] %s2961
      %2967 = dma.vmem_to_hbm [thread:$0]  %s2960, 32, %s2962, [#allocation4], 32, 32, 2
    $region25: #{tpu_custom_call.1} parent=1 // pred_fallthru
      _
    // Predicated region
    $region26: #{tpu_custom_call.1} parent=1 // pred_check
      _
    $region27: #{tpu_custom_call.1} parent=1 // pred_check_branch
      %2969 = sbr.rel (0) target = $region29
    $region28: #{tpu_custom_call.1} parent=1 // pred_region
      %2971 = dma.done [#allocation4], 128
    $region29: #{tpu_custom_call.1} parent=1 // pred_fallthru
      _
    %2972 = vsyncpa [#allocation3], 1
    %2973 = vsyncpa [#allocation6], 1
    %2974 = vsyncpa [#allocation4], 1

</llo_original>
